<compile_context>
chip_gen: v6e
topology: v6e:2x2x1
jax: 0.10.0
libtpu: 0.0.40
codegen_flags: <defaults>
</compile_context>

<pallas_src>
import functools

import jax
import jax.numpy as jnp
from jax.experimental import pallas as pl
from jax.experimental.pallas import tpu as pltpu


def _conv3x3_kernel(x_ref, w_ref, b_ref, o_ref, xp_ref, col_ref, *, mxu_dtype):
    # x_ref  : (1, Cin, H, W)        one batch element (NCHW)
    # w_ref  : (Cout, 9*Cin)         weights, K ordered (kh, kw, cin)
    # b_ref  : (Cout, 1)             bias
    # o_ref  : (1, Cout, H*W)        output, H*W on the lane axis (lane-dense)
    # xp_ref : VMEM (Cin, H+2, W+2)  zero-padded input scratch
    # col_ref: VMEM (9*Cin, H*W)     im2col scratch
    Cin, Hp, Wp = xp_ref.shape
    H, W = Hp - 2, Wp - 2
    HW = H * W
    Cout = o_ref.shape[1]

    # In-kernel zero padding (cheap VPU work on a tiny VMEM tile).
    xp_ref[...] = jnp.zeros_like(xp_ref)
    xp_ref[:, 1:H + 1, 1:W + 1] = x_ref[0].astype(xp_ref.dtype)

    # im2col: one shifted copy per tap into rows of the (9*Cin, H*W) matrix.
    # (A single materialization; replaces nine per-tap slice+reshape+matmul.)
    for kh in range(3):
        for kw in range(3):
            t = kh * 3 + kw
            tap = xp_ref[:, kh:kh + H, kw:kw + W].reshape(Cin, HW)
            col_ref[t * Cin:(t + 1) * Cin, :] = tap

    # One MXU matmul, fp32 accumulation: (Cout, 9*Cin) @ (9*Cin, H*W).
    acc = jnp.dot(w_ref[...].astype(mxu_dtype),
                  col_ref[...].astype(mxu_dtype),
                  preferred_element_type=jnp.float32)
    out = acc + b_ref[...].astype(jnp.float32)      # bias broadcast over lanes
    o_ref[...] = out.reshape(1, Cout, HW).astype(o_ref.dtype)


def patch_embed_forward(x_nchw, weight, bias, *, mxu_dtype=jnp.bfloat16):
    """3x3 conv, stride 1, padding 1 (PatchEmbed.forward).

    x_nchw : (N, Cin, H, W)
    weight : (Cout, Cin, 3, 3)   -- PyTorch Conv2d weight layout
    bias   : (Cout,)
    returns: (N, Cout, H, W)
    """
    N, Cin, H, W = x_nchw.shape
    Cout = weight.shape[0]

    # Tiny wrapper-side parameter reshapes only (no activation transposes).
    # K axis ordered (kh, kw, cin) to match the kernel's im2col stacking.
    w2d = jnp.transpose(weight, (0, 2, 3, 1)).reshape(Cout, 9 * Cin)
    b2d = bias.reshape(Cout, 1)

    kernel = functools.partial(_conv3x3_kernel, mxu_dtype=mxu_dtype)

    out = pl.pallas_call(
        kernel,
        out_shape=jax.ShapeDtypeStruct((N, Cout, H * W), x_nchw.dtype),
        grid_spec=pltpu.PrefetchScalarGridSpec(
            num_scalar_prefetch=0,
            grid=(N,),
            in_specs=[
                pl.BlockSpec((1, Cin, H, W), lambda n: (n, 0, 0, 0)),
                pl.BlockSpec((Cout, 9 * Cin), lambda n: (0, 0)),
                pl.BlockSpec((Cout, 1), lambda n: (0, 0)),
            ],
            out_specs=pl.BlockSpec((1, Cout, H * W), lambda n: (n, 0, 0)),
            scratch_shapes=[
                pltpu.VMEM((Cin, H + 2, W + 2), jnp.float32),
                pltpu.VMEM((9 * Cin, H * W), jnp.float32),
            ],
        ),
        compiler_params=pltpu.CompilerParams(
            dimension_semantics=("parallel",)),
    )(x_nchw, w2d, b2d)

    # Contiguous (free) reshape back to the PyTorch output layout.
    return out.reshape(N, Cout, H, W)


if __name__ == "__main__":
    # Small shapes consistent with the module's forward:
    # batch=2, in_chans=4, spatial=16x16, embed_dim=32.
    N, Cin, H, W = 2, 4, 16, 16
    Cout = 32

    key = jax.random.PRNGKey(0)
    kx, kwt, kb = jax.random.split(key, 3)
    x = jax.random.normal(kx, (N, Cin, H, W), dtype=jnp.float32)
    weight = jax.random.normal(kwt, (Cout, Cin, 3, 3), dtype=jnp.float32) * 0.1
    bias = jax.random.normal(kb, (Cout,), dtype=jnp.float32) * 0.1

    out = patch_embed_forward(x, weight, bias)           # bf16 MXU operands
    out = jax.block_until_ready(out)

    # Reference check against XLA's conv (same NCHW semantics as PyTorch).
    ref = jax.lax.conv_general_dilated(
        x, weight, window_strides=(1, 1), padding=((1, 1), (1, 1)),
        dimension_numbers=("NCHW", "OIHW", "NCHW"))
    ref = ref + bias[None, :, None, None]

    assert out.shape == (N, Cout, H, W)
    # bf16 operands (fp32 accumulate) -> loosened tolerance vs fp32 reference.
    assert jnp.allclose(out, ref, atol=3e-2, rtol=3e-2)

    # fp32 MXU path must match tightly (verifies the im2col indexing itself).
    out_f32 = jax.block_until_ready(
        patch_embed_forward(x, weight, bias, mxu_dtype=jnp.float32))
    assert jnp.allclose(out_f32, ref, atol=1e-4, rtol=1e-4)

    print("KERNEL_OK")
</pallas_src>

<mosaic_0001>
module attributes {stable_mosaic.version = 11 : i64} {
  func.func @_conv3x3_kernel(%arg0: i32, %arg1: memref<1x4x16x16xf32, #tpu.memory_space<vmem>>, %arg2: memref<32x36xf32, #tpu.memory_space<vmem>>, %arg3: memref<32x1xf32, #tpu.memory_space<vmem>>, %arg4: memref<1x32x256xf32, #tpu.memory_space<vmem>>, %arg5: memref<4x18x18xf32, #tpu.memory_space<vmem>>, %arg6: memref<36x256xf32, #tpu.memory_space<vmem>>) attributes {dimension_semantics = [#tpu.dimension_semantics<parallel>], iteration_bounds = array<i64: 2>, scalar_prefetch = 0 : i64, scratch_operands = 2 : i64, tpu.core_type = #tpu.core_type<tc>, window_params = [{transform_indices = @transform_0, window_bounds = array<i64: 1, 4, 16, 16>}, {pipeline_mode = #tpu.pipeline_mode<synchronous>, transform_indices = @transform_1, window_bounds = array<i64: 32, 36>}, {pipeline_mode = #tpu.pipeline_mode<synchronous>, transform_indices = @transform_2, window_bounds = array<i64: 32, 1>}, {transform_indices = @transform_3, window_bounds = array<i64: 1, 32, 256>}]} {
    %cst = arith.constant 0.000000e+00 : f32
    %0 = vector.broadcast %cst : f32 to vector<4x18x18xf32>
    %c0 = arith.constant 0 : index
    %c0_0 = arith.constant 0 : index
    %c0_1 = arith.constant 0 : index
    %1 = vector.load %arg5[%c0, %c0_0, %c0_1] : memref<4x18x18xf32, #tpu.memory_space<vmem>>, vector<4x18x18xf32>
    tpu.vector_store %arg5[%c0, %c0_0, %c0_1], %0 {strides = array<i32>} : memref<4x18x18xf32, #tpu.memory_space<vmem>>, vector<4x18x18xf32>,
    %c0_2 = arith.constant 0 : index
    %c0_3 = arith.constant 0 : index
    %c0_4 = arith.constant 0 : index
    %c0_5 = arith.constant 0 : index
    %2 = vector.load %arg1[%c0_2, %c0_3, %c0_4, %c0_5] : memref<1x4x16x16xf32, #tpu.memory_space<vmem>>, vector<1x4x16x16xf32>
    %3 = vector.shape_cast %2 : vector<1x4x16x16xf32> to vector<4x16x16xf32>
    %c0_6 = arith.constant 0 : index
    %c1 = arith.constant 1 : index
    %c1_7 = arith.constant 1 : index
    %4 = vector.load %arg5[%c0_6, %c1, %c1_7] : memref<4x18x18xf32, #tpu.memory_space<vmem>>, vector<4x16x16xf32>
    tpu.vector_store %arg5[%c0_6, %c1, %c1_7], %3 {strides = array<i32>} : memref<4x18x18xf32, #tpu.memory_space<vmem>>, vector<4x16x16xf32>,
    %c0_8 = arith.constant 0 : index
    %c0_9 = arith.constant 0 : index
    %c0_10 = arith.constant 0 : index
    %5 = vector.load %arg5[%c0_8, %c0_9, %c0_10] : memref<4x18x18xf32, #tpu.memory_space<vmem>>, vector<4x16x16xf32>
    %6 = vector.shape_cast %5 : vector<4x16x16xf32> to vector<4x256xf32>
    %c0_11 = arith.constant 0 : index
    %c0_12 = arith.constant 0 : index
    %7 = vector.load %arg6[%c0_11, %c0_12] : memref<36x256xf32, #tpu.memory_space<vmem>>, vector<4x256xf32>
    tpu.vector_store %arg6[%c0_11, %c0_12], %6 {strides = array<i32>} : memref<36x256xf32, #tpu.memory_space<vmem>>, vector<4x256xf32>,
    %c0_13 = arith.constant 0 : index
    %c0_14 = arith.constant 0 : index
    %c1_15 = arith.constant 1 : index
    %8 = vector.load %arg5[%c0_13, %c0_14, %c1_15] : memref<4x18x18xf32, #tpu.memory_space<vmem>>, vector<4x16x16xf32>
    %9 = vector.shape_cast %8 : vector<4x16x16xf32> to vector<4x256xf32>
    %c4 = arith.constant 4 : index
    %c0_16 = arith.constant 0 : index
    %10 = vector.load %arg6[%c4, %c0_16] : memref<36x256xf32, #tpu.memory_space<vmem>>, vector<4x256xf32>
    tpu.vector_store %arg6[%c4, %c0_16], %9 {strides = array<i32>} : memref<36x256xf32, #tpu.memory_space<vmem>>, vector<4x256xf32>,
    %c0_17 = arith.constant 0 : index
    %c0_18 = arith.constant 0 : index
    %c2 = arith.constant 2 : index
    %11 = vector.load %arg5[%c0_17, %c0_18, %c2] : memref<4x18x18xf32, #tpu.memory_space<vmem>>, vector<4x16x16xf32>
    %12 = vector.shape_cast %11 : vector<4x16x16xf32> to vector<4x256xf32>
    %c8 = arith.constant 8 : index
    %c0_19 = arith.constant 0 : index
    %13 = vector.load %arg6[%c8, %c0_19] : memref<36x256xf32, #tpu.memory_space<vmem>>, vector<4x256xf32>
    tpu.vector_store %arg6[%c8, %c0_19], %12 {strides = array<i32>} : memref<36x256xf32, #tpu.memory_space<vmem>>, vector<4x256xf32>,
    %c0_20 = arith.constant 0 : index
    %c1_21 = arith.constant 1 : index
    %c0_22 = arith.constant 0 : index
    %14 = vector.load %arg5[%c0_20, %c1_21, %c0_22] : memref<4x18x18xf32, #tpu.memory_space<vmem>>, vector<4x16x16xf32>
    %15 = vector.shape_cast %14 : vector<4x16x16xf32> to vector<4x256xf32>
    %c12 = arith.constant 12 : index
    %c0_23 = arith.constant 0 : index
    %16 = vector.load %arg6[%c12, %c0_23] : memref<36x256xf32, #tpu.memory_space<vmem>>, vector<4x256xf32>
    tpu.vector_store %arg6[%c12, %c0_23], %15 {strides = array<i32>} : memref<36x256xf32, #tpu.memory_space<vmem>>, vector<4x256xf32>,
    %c0_24 = arith.constant 0 : index
    %c1_25 = arith.constant 1 : index
    %c1_26 = arith.constant 1 : index
    %17 = vector.load %arg5[%c0_24, %c1_25, %c1_26] : memref<4x18x18xf32, #tpu.memory_space<vmem>>, vector<4x16x16xf32>
    %18 = vector.shape_cast %17 : vector<4x16x16xf32> to vector<4x256xf32>
    %c16 = arith.constant 16 : index
    %c0_27 = arith.constant 0 : index
    %19 = vector.load %arg6[%c16, %c0_27] : memref<36x256xf32, #tpu.memory_space<vmem>>, vector<4x256xf32>
    tpu.vector_store %arg6[%c16, %c0_27], %18 {strides = array<i32>} : memref<36x256xf32, #tpu.memory_space<vmem>>, vector<4x256xf32>,
    %c0_28 = arith.constant 0 : index
    %c1_29 = arith.constant 1 : index
    %c2_30 = arith.constant 2 : index
    %20 = vector.load %arg5[%c0_28, %c1_29, %c2_30] : memref<4x18x18xf32, #tpu.memory_space<vmem>>, vector<4x16x16xf32>
    %21 = vector.shape_cast %20 : vector<4x16x16xf32> to vector<4x256xf32>
    %c20 = arith.constant 20 : index
    %c0_31 = arith.constant 0 : index
    %22 = vector.load %arg6[%c20, %c0_31] : memref<36x256xf32, #tpu.memory_space<vmem>>, vector<4x256xf32>
    tpu.vector_store %arg6[%c20, %c0_31], %21 {strides = array<i32>} : memref<36x256xf32, #tpu.memory_space<vmem>>, vector<4x256xf32>,
    %c0_32 = arith.constant 0 : index
    %c2_33 = arith.constant 2 : index
    %c0_34 = arith.constant 0 : index
    %23 = vector.load %arg5[%c0_32, %c2_33, %c0_34] : memref<4x18x18xf32, #tpu.memory_space<vmem>>, vector<4x16x16xf32>
    %24 = vector.shape_cast %23 : vector<4x16x16xf32> to vector<4x256xf32>
    %c24 = arith.constant 24 : index
    %c0_35 = arith.constant 0 : index
    %25 = vector.load %arg6[%c24, %c0_35] : memref<36x256xf32, #tpu.memory_space<vmem>>, vector<4x256xf32>
    tpu.vector_store %arg6[%c24, %c0_35], %24 {strides = array<i32>} : memref<36x256xf32, #tpu.memory_space<vmem>>, vector<4x256xf32>,
    %c0_36 = arith.constant 0 : index
    %c2_37 = arith.constant 2 : index
    %c1_38 = arith.constant 1 : index
    %26 = vector.load %arg5[%c0_36, %c2_37, %c1_38] : memref<4x18x18xf32, #tpu.memory_space<vmem>>, vector<4x16x16xf32>
    %27 = vector.shape_cast %26 : vector<4x16x16xf32> to vector<4x256xf32>
    %c28 = arith.constant 28 : index
    %c0_39 = arith.constant 0 : index
    %28 = vector.load %arg6[%c28, %c0_39] : memref<36x256xf32, #tpu.memory_space<vmem>>, vector<4x256xf32>
    tpu.vector_store %arg6[%c28, %c0_39], %27 {strides = array<i32>} : memref<36x256xf32, #tpu.memory_space<vmem>>, vector<4x256xf32>,
    %c0_40 = arith.constant 0 : index
    %c2_41 = arith.constant 2 : index
    %c2_42 = arith.constant 2 : index
    %29 = vector.load %arg5[%c0_40, %c2_41, %c2_42] : memref<4x18x18xf32, #tpu.memory_space<vmem>>, vector<4x16x16xf32>
    %30 = vector.shape_cast %29 : vector<4x16x16xf32> to vector<4x256xf32>
    %c32 = arith.constant 32 : index
    %c0_43 = arith.constant 0 : index
    %31 = vector.load %arg6[%c32, %c0_43] : memref<36x256xf32, #tpu.memory_space<vmem>>, vector<4x256xf32>
    tpu.vector_store %arg6[%c32, %c0_43], %30 {strides = array<i32>} : memref<36x256xf32, #tpu.memory_space<vmem>>, vector<4x256xf32>,
    %c0_44 = arith.constant 0 : index
    %c0_45 = arith.constant 0 : index
    %32 = vector.load %arg2[%c0_44, %c0_45] : memref<32x36xf32, #tpu.memory_space<vmem>>, vector<32x36xf32>
    %33 = arith.truncf %32 : vector<32x36xf32> to vector<32x36xbf16>
    %c0_46 = arith.constant 0 : index
    %c0_47 = arith.constant 0 : index
    %34 = vector.load %arg6[%c0_46, %c0_47] : memref<36x256xf32, #tpu.memory_space<vmem>>, vector<36x256xf32>
    %35 = arith.truncf %34 : vector<36x256xf32> to vector<36x256xbf16>
    %cst_48 = arith.constant dense<0.000000e+00> : vector<32x256xf32>
    %36 = tpu.matmul %33, %35, %cst_48 {dimension_numbers = #tpu.dot_dimension_numbers<[1], [0], [0], [1], [0, 0, 1, 1], [], []>} : vector<32x36xbf16>, vector<36x256xbf16>, vector<32x256xf32> -> vector<32x256xf32>
    %c0_49 = arith.constant 0 : index
    %c0_50 = arith.constant 0 : index
    %37 = vector.load %arg3[%c0_49, %c0_50] : memref<32x1xf32, #tpu.memory_space<vmem>>, vector<32x1xf32>
    %38 = vector.broadcast %37 : vector<32x1xf32> to vector<32x256xf32>
    %39 = arith.addf %36, %38 : vector<32x256xf32>
    %40 = vector.shape_cast %39 : vector<32x256xf32> to vector<1x32x256xf32>
    %c0_51 = arith.constant 0 : index
    %c0_52 = arith.constant 0 : index
    %c0_53 = arith.constant 0 : index
    %41 = vector.load %arg4[%c0_51, %c0_52, %c0_53] : memref<1x32x256xf32, #tpu.memory_space<vmem>>, vector<1x32x256xf32>
    tpu.vector_store %arg4[%c0_51, %c0_52, %c0_53], %40 {strides = array<i32>} : memref<1x32x256xf32, #tpu.memory_space<vmem>>, vector<1x32x256xf32>,
    return
  }
  func.func @transform_0(%arg0: i32) -> (i32, i32, i32, i32) {
    %c0_i32 = arith.constant 0 : i32
    %c0_i32_0 = arith.constant 0 : i32
    %c0_i32_1 = arith.constant 0 : i32
    %c0_i32_2 = arith.constant 0 : i32
    return %arg0, %c0_i32, %c0_i32_0, %c0_i32_1 : i32, i32, i32, i32
  }
  func.func @transform_1(%arg0: i32) -> (i32, i32) {
    %c0_i32 = arith.constant 0 : i32
    %c0_i32_0 = arith.constant 0 : i32
    %c0_i32_1 = arith.constant 0 : i32
    return %c0_i32, %c0_i32_0 : i32, i32
  }
  func.func @transform_2(%arg0: i32) -> (i32, i32) {
    %c0_i32 = arith.constant 0 : i32
    %c0_i32_0 = arith.constant 0 : i32
    %c0_i32_1 = arith.constant 0 : i32
    return %c0_i32, %c0_i32_0 : i32, i32
  }
  func.func @transform_3(%arg0: i32) -> (i32, i32, i32) {
    %c0_i32 = arith.constant 0 : i32
    %c0_i32_0 = arith.constant 0 : i32
    %c0_i32_1 = arith.constant 0 : i32
    return %arg0, %c0_i32, %c0_i32_0 : i32, i32, i32
  }
}

</mosaic_0001>

<llo_original>
// kernel: tpu_custom_call.1
$region0: #{tpu_custom_call.1}
  #allocation0 [shape = 'u32[]', space=smem, size = 0x4, offset = 0x4, fixed_abs, tag = 'smem constant byte address 0x4 - core index']
  #allocation1 [shape = 'u32[144,128]{1,0:T(1,128)}', space=vmem, size = 0x12000, scoped, tag = 'internal scratch']
  #allocation2 [shape = 'f32[4,18,18]{2,1,0:T(8,128)}', space=vmem, size = 0xc000, scoped, tag = 'scratch operand']
  #allocation3 [shape = 'f32[36,256]{1,0:T(8,128)}', space=vmem, size = 0xa000, scoped, tag = 'scratch operand']
  %s0 = inlined_call_operand.hbm [shape: f32[2,4,16,16], index: 0, kind: input, shape index: {}]
  %s1 = inlined_call_operand.vmem [shape: f32[32,36], index: 1, kind: input, shape index: {}]
  %s2 = inlined_call_operand.vmem [shape: f32[32,1], index: 2, kind: input, shape index: {}]
  %s3 = inlined_call_operand.hbm [shape: f32[2,32,256], index: 3, kind: output, shape index: {}]
  %s4 = sld [smem:[#allocation0]]
  $region49: #{tpu_custom_call.1} parent=0
    _
  %s6 = ssub.s32 1, %s4
  %s7 = scalar_select 0, %s6, %s4
  $region1: #{tpu_custom_call.1} parent=0
    #allocation4 [shape = 'u8[65536]{0}', space=vmem, size = 0x10000, scoped, tag = 'input window, operand 0']
    #allocation5 [shape = 's32[2]{0}', space=sflag, size = 0x8, scoped, tag = 'scoped memory for tpu_custom_call.1']
    #allocation6 [shape = 's32[2]{0}', space=sflag, size = 0x8, scoped, tag = 'scoped memory for tpu_custom_call.1']
    #allocation7 [shape = 'u8[65536]{0}', space=vmem, size = 0x10000, scoped, tag = 'output window, operand 0']
    %8 = vsyncpa [#allocation5], 0
    %s9 = scalar_lea.sflag [#allocation5], 1
    %10 = vsyncpa %s9, 0
    %11 = vsyncpa [#allocation6], 0
    %s12 = scalar_lea.sflag [#allocation6], 1
    %13 = vsyncpa %s12, 0
    loop: start=0, step=1, limit=4
    $region2: #{tpu_custom_call.1} parent=1 // loop_pre_header
      _
    $region3: #{tpu_custom_call.1} parent=1 // loop_header
      %s15 = sphi 0, %s19
      %p16 = scmp.ge.s32.totalorder %s15, 4
      %s25 = sphi 0, %s27
      %s28 = sphi 0, %s25
      %s29 = sphi 0, %s28
      %s45 = sphi 0, %s29
      %s49 = sphi 0, %s49
      %s51 = sphi 0, %s49
      %s52 = sphi 0, %s51
      %s66 = sphi 0, %s52
      %s70 = sphi 0, %s70
      %s72 = sphi 0, %s70
      %s73 = sphi 0, %s72
      %s87 = sphi 0, %s73
      %s93 = sphi 0, %s95
      %s96 = sphi 0, %s93
      %s97 = sphi 0, %s96
      %s113 = sphi 0, %s97
    $region4: #{tpu_custom_call.1} parent=1 // loop_header_branch
      %18 = sbr.rel (%p16) target = $region8
    $region5: #{tpu_custom_call.1} parent=1 // loop_body
      %s20 = ssub.s32 %s15, 1
      %s21 = ssub.s32 %s15, 2
      %s22 = sadd.s32 %s15, 1
      %s23 = ssub.s32 %s15, %s22
      %p24 = scmp.eq.s32.totalorder %s23, 0
      %s26 = sadd.s32 %s25, 1
      %s27 = scalar_select %p24, %s25, %s26
      %p30 = pneg %p24
      %p31 = scmp.eq.s32.totalorder %s15, 1
      %p32 = por %p30, %p31
      %p33 = scmp.ne.s32.totalorder %s25, %s28
      %p34 = scmp.eq.s32.totalorder %s15, 0
      %p35 = por %p33, %p34
      %p36 = scmp.ne.s32.totalorder %s25, %s28
      %p37 = scmp.eq.s32.totalorder %s20, 1
      %p38 = por %p36, %p37
      %p39 = scmp.ne.s32.totalorder %s28, %s29
      %p40 = scmp.eq.s32.totalorder %s20, 0
      %p41 = por %p39, %p40
      %p42 = scmp.ne.s32.totalorder %s28, %s29
      %p43 = scmp.eq.s32.totalorder %s21, 1
      %p44 = por %p42, %p43
      %p46 = scmp.ne.s32.totalorder %s29, %s45
      %p47 = scmp.eq.s32.totalorder %s21, 0
      %p48 = por %p46, %p47
      %s50 = sadd.s32 %s49, 1
      %p53 = scmp.eq.s32.totalorder %s15, 1
      %p54 = scmp.ne.s32.totalorder %s49, %s51
      %p55 = scmp.eq.s32.totalorder %s15, 0
      %p56 = por %p54, %p55
      %p57 = scmp.ne.s32.totalorder %s49, %s51
      %p58 = scmp.eq.s32.totalorder %s20, 1
      %p59 = por %p57, %p58
      %p60 = scmp.ne.s32.totalorder %s51, %s52
      %p61 = scmp.eq.s32.totalorder %s20, 0
      %p62 = por %p60, %p61
      %p63 = scmp.ne.s32.totalorder %s51, %s52
      %p64 = scmp.eq.s32.totalorder %s21, 1
      %p65 = por %p63, %p64
      %p67 = scmp.ne.s32.totalorder %s52, %s66
      %p68 = scmp.eq.s32.totalorder %s21, 0
      %p69 = por %p67, %p68
      %s71 = sadd.s32 %s70, 1
      %p74 = scmp.eq.s32.totalorder %s15, 1
      %p75 = scmp.ne.s32.totalorder %s70, %s72
      %p76 = scmp.eq.s32.totalorder %s15, 0
      %p77 = por %p75, %p76
      %p78 = scmp.ne.s32.totalorder %s70, %s72
      %p79 = scmp.eq.s32.totalorder %s20, 1
      %p80 = por %p78, %p79
      %p81 = scmp.ne.s32.totalorder %s72, %s73
      %p82 = scmp.eq.s32.totalorder %s20, 0
      %p83 = por %p81, %p82
      %p84 = scmp.ne.s32.totalorder %s72, %s73
      %p85 = scmp.eq.s32.totalorder %s21, 1
      %p86 = por %p84, %p85
      %p88 = scmp.ne.s32.totalorder %s73, %s87
      %p89 = scmp.eq.s32.totalorder %s21, 0
      %p90 = por %p88, %p89
      %s91 = ssub.s32 %s15, %s22
      %p92 = scmp.eq.s32.totalorder %s91, 0
      %s94 = sadd.s32 %s93, 1
      %s95 = scalar_select %p92, %s93, %s94
      %p98 = pneg %p92
      %p99 = scmp.eq.s32.totalorder %s15, 1
      %p100 = por %p98, %p99
      %p101 = scmp.ne.s32.totalorder %s93, %s96
      %p102 = scmp.eq.s32.totalorder %s15, 0
      %p103 = por %p101, %p102
      %p104 = scmp.ne.s32.totalorder %s93, %s96
      %p105 = scmp.eq.s32.totalorder %s20, 1
      %p106 = por %p104, %p105
      %p107 = scmp.ne.s32.totalorder %s96, %s97
      %p108 = scmp.eq.s32.totalorder %s20, 0
      %p109 = por %p107, %p108
      %p110 = scmp.ne.s32.totalorder %s96, %s97
      %p111 = scmp.eq.s32.totalorder %s21, 1
      %p112 = por %p110, %p111
      %p114 = scmp.ne.s32.totalorder %s97, %s113
      %p115 = scmp.eq.s32.totalorder %s21, 0
      %p116 = por %p114, %p115
      %p117 = scmp.le.s32.totalorder 1, %s15
      %p118 = scmp.lt.s32.totalorder %s15, 3
      %p119 = pnand %p117, %p118
      %p120 = pneg %p119
      // Predicated region
      $region9: #{tpu_custom_call.1} parent=5 // pred_check
        _
      $region10: #{tpu_custom_call.1} parent=5 // pred_check_branch
        %122 = sbr.rel (%p119) target = $region12
      $region11: #{tpu_custom_call.1} parent=5 // pred_region
        %s123 = ssub.s32 %s15, 1
        // Predicated region
        $region13: #{tpu_custom_call.1} parent=11 // pred_check
          %p124 = pneg %p62
        $region14: #{tpu_custom_call.1} parent=11 // pred_check_branch
          %126 = sbr.rel (%p124) target = $region16
        $region15: #{tpu_custom_call.1} parent=11 // pred_region
          _
        $region16: #{tpu_custom_call.1} parent=11 // pred_fallthru
          _
        // Predicated region
        $region17: #{tpu_custom_call.1} parent=11 // pred_check
          %p127 = pneg %p83
        $region18: #{tpu_custom_call.1} parent=11 // pred_check_branch
          %129 = sbr.rel (%p127) target = $region20
        $region19: #{tpu_custom_call.1} parent=11 // pred_region
          _
        $region20: #{tpu_custom_call.1} parent=11 // pred_fallthru
          _
      $region12: #{tpu_custom_call.1} parent=5 // pred_fallthru
        _
      %p130 = scmp.lt.s32.totalorder %s15, 2
      // Predicated region
      $region21: #{tpu_custom_call.1} parent=5 // pred_check
        %p131 = pneg %p130
      $region22: #{tpu_custom_call.1} parent=5 // pred_check_branch
        %133 = sbr.rel (%p131) target = $region24
      $region23: #{tpu_custom_call.1} parent=5 // pred_region
        // Predicated region
        $region25: #{tpu_custom_call.1} parent=23 // pred_check
          %p134 = pneg %p35
        $region26: #{tpu_custom_call.1} parent=23 // pred_check_branch
          %136 = sbr.rel (%p134) target = $region28
        $region27: #{tpu_custom_call.1} parent=23 // pred_region
          %s137 = sand.u32 %s25, 1
          %s138 = scalar_lea.sflag [#allocation5], %s137
          %s139 = sand.u32 %s25, 1
          %s140 = smul.addr %s139, 64
          %s141 = scalar_lea.vmem [#allocation4], %s140
          %s143 = ssub.s32 1024, 1024
          %144 = vsyncadd %s138, %s143
          %s145 = smul.addr %s15, 8
          %s146 = smul.addr %s145, 128
          %s147 = scalar_lea.hbm %s0, %s146
          %s148 = sshll.u32 %s141, 4
          %s149 = int_to_ptr.vmem [resolvable:$true] %s148
          %154 = dma.hbm_to_vmem [thread:$0]  %s147, 1024, %s149, %s138, 128, 128, 8
        $region28: #{tpu_custom_call.1} parent=23 // pred_fallthru
          _
      $region24: #{tpu_custom_call.1} parent=5 // pred_fallthru
        _
      %p155 = scmp.le.s32.totalorder 1, %s15
      %p156 = scmp.lt.s32.totalorder %s15, 3
      %p157 = pnand %p155, %p156
      %p158 = pneg %p157
      // Predicated region
      $region29: #{tpu_custom_call.1} parent=5 // pred_check
        _
      $region30: #{tpu_custom_call.1} parent=5 // pred_check_branch
        %160 = sbr.rel (%p157) target = $region32
      $region31: #{tpu_custom_call.1} parent=5 // pred_region
        %s161 = ssub.s32 %s15, 1
        %s162 = sand.u32 %s28, 1
        %s163 = scalar_lea.sflag [#allocation5], %s162
        %s164 = sand.u32 %s28, 1
        %s165 = smul.addr %s164, 64
        %s166 = scalar_lea.vmem [#allocation4], %s165
        // Predicated region
        $region33: #{tpu_custom_call.1} parent=31 // pred_check
          %p167 = pneg %p41
        $region34: #{tpu_custom_call.1} parent=31 // pred_check_branch
          %169 = sbr.rel (%p167) target = $region36
        $region35: #{tpu_custom_call.1} parent=31 // pred_region
          %170 = dma.done %s163, 1024
        $region36: #{tpu_custom_call.1} parent=31 // pred_fallthru
          _
        %s171 = sand.u32 %s28, 1
        %s172 = scalar_lea.sflag [#allocation5], %s171
        %s173 = sand.u32 %s28, 1
        %s174 = smul.addr %s173, 64
        %s175 = scalar_lea.vmem [#allocation4], %s174
        %p176 = pneg %p41
        %p177 = pneg %p38
        %p178 = pneg %p62
        %p179 = pneg %p59
        %p180 = pneg %p83
        %p181 = pneg %p80
        %p182 = pneg %p109
        %p183 = pneg %p106
        %s184 = sand.u32 %s96, 1
        %s185 = scalar_lea.sflag [#allocation6], %s184
        %s186 = sand.u32 %s96, 1
        %s187 = smul.addr %s186, 64
        %s188 = scalar_lea.vmem [#allocation7], %s187
        %vm190 = vcmask 146432
        %191 = vst.msk [vmem:[#allocation2] sm:$0xff] %vm190, 0.0
        %192 = vst.msk [vmem:[#allocation2 + $0x8] sm:$0xff] %vm190, 0.0
        %vm193 = vcmask 140288
        %194 = vst.msk [vmem:[#allocation2 + $0x10] sm:$0x3] %vm193, 0.0
        %195 = vst.msk [vmem:[#allocation2 + $0x18] sm:$0xff] %vm190, 0.0
        %196 = vst.msk [vmem:[#allocation2 + $0x20] sm:$0xff] %vm190, 0.0
        %197 = vst.msk [vmem:[#allocation2 + $0x28] sm:$0x3] %vm193, 0.0
        %198 = vst.msk [vmem:[#allocation2 + $0x30] sm:$0xff] %vm190, 0.0
        %199 = vst.msk [vmem:[#allocation2 + $0x38] sm:$0xff] %vm190, 0.0
        %200 = vst.msk [vmem:[#allocation2 + $0x40] sm:$0x3] %vm193, 0.0
        %201 = vst.msk [vmem:[#allocation2 + $0x48] sm:$0xff] %vm190, 0.0
        %202 = vst.msk [vmem:[#allocation2 + $0x50] sm:$0xff] %vm190, 0.0
        %203 = vst.msk [vmem:[#allocation2 + $0x58] sm:$0x3] %vm193, 0.0
        %v204 = vld [vmem:[%s166] sm:$0xff]
        %v205 = vld [vmem:[%s166 + $0x8] sm:$0xff]
        %v206 = vld [vmem:[%s166 + $0x10] sm:$0xff]
        %v207 = vld [vmem:[%s166 + $0x18] sm:$0xff]
        %v208 = vld [vmem:[%s166 + $0x20] sm:$0xff]
        %v209 = vld [vmem:[%s166 + $0x28] sm:$0xff]
        %v210 = vld [vmem:[%s166 + $0x30] sm:$0xff]
        %v211 = vld [vmem:[%s166 + $0x38] sm:$0xff]
        %220 = vrot.lane.b32.xlu0 %v204, 1
        %v221 = vpop.permute.xlu0 %220
        %222 = vrot.lane.b32.xlu0 %v205, 1
        %v223 = vpop.permute.xlu0 %222
        %224 = vrot.lane.b32.xlu0 %v206, 1
        %v225 = vpop.permute.xlu0 %224
        %226 = vrot.lane.b32.xlu0 %v207, 1
        %v227 = vpop.permute.xlu0 %226
        %228 = vrot.lane.b32.xlu0 %v208, 1
        %v229 = vpop.permute.xlu0 %228
        %230 = vrot.lane.b32.xlu0 %v209, 1
        %v231 = vpop.permute.xlu0 %230
        %232 = vrot.lane.b32.xlu0 %v210, 1
        %v233 = vpop.permute.xlu0 %232
        %234 = vrot.lane.b32.xlu0 %v211, 1
        %v235 = vpop.permute.xlu0 %234
        %vm244 = vcmask 138248
        %245 = vst.msk [vmem:[#allocation2 + $0x1] sm:$0xff] %vm244, %v221
        %246 = vst.msk [vmem:[#allocation2 + $0x9] sm:$0xff] %vm244, %v223
        %247 = vst.msk [vmem:[#allocation2 + $0x19] sm:$0xff] %vm244, %v225
        %248 = vst.msk [vmem:[#allocation2 + $0x21] sm:$0xff] %vm244, %v227
        %249 = vst.msk [vmem:[#allocation2 + $0x31] sm:$0xff] %vm244, %v229
        %250 = vst.msk [vmem:[#allocation2 + $0x39] sm:$0xff] %vm244, %v231
        %251 = vst.msk [vmem:[#allocation2 + $0x49] sm:$0xff] %vm244, %v233
        %252 = vst.msk [vmem:[#allocation2 + $0x51] sm:$0xff] %vm244, %v235
        %v253 = vld [vmem:[#allocation2] sm:$0xff]
        %v254 = vld [vmem:[#allocation2 + $0x8] sm:$0xff]
        %v255 = vld [vmem:[#allocation2 + $0x18] sm:$0xff]
        %v256 = vld [vmem:[#allocation2 + $0x20] sm:$0xff]
        %v257 = vld [vmem:[#allocation2 + $0x30] sm:$0xff]
        %v258 = vld [vmem:[#allocation2 + $0x38] sm:$0xff]
        %v259 = vld [vmem:[#allocation2 + $0x48] sm:$0xff]
        %v260 = vld [vmem:[#allocation2 + $0x50] sm:$0xff]
        %v261 = vcombine.low %v253, %v257
        %v262 = vcombine.high %v253, %v257
        %v264 = vunpack.c.l.s4 1983009808
        %v265 = vunpack.c.0.s8 %v264
        %v266 = vlaneseq
        %v267 = vshrl.u32 %v266, 7
        %v268 = vsub.s32 %v265, %v267
        %v269 = vrot.slane %v261, %v268
        %v271 = vunpack.c.l.s4 1983009808
        %v272 = vunpack.c.0.s8 %v271
        %v273 = vlaneseq
        %v274 = vshrl.u32 %v273, 7
        %v275 = vsub.s32 %v272, %v274
        %v276 = vrot.slane %v262, %v275
        %v277 = vcombine.low %v255, %v259
        %v278 = vcombine.high %v255, %v259
        %v280 = vunpack.c.l.s4 1983009808
        %v281 = vunpack.c.0.s8 %v280
        %v282 = vlaneseq
        %v283 = vshrl.u32 %v282, 7
        %v284 = vsub.s32 %v281, %v283
        %v285 = vrot.slane %v277, %v284
        %v287 = vunpack.c.l.s4 1983009808
        %v288 = vunpack.c.0.s8 %v287
        %v289 = vlaneseq
        %v290 = vshrl.u32 %v289, 7
        %v291 = vsub.s32 %v288, %v290
        %v292 = vrot.slane %v278, %v291
        %v293 = vcombine.low %v269, %v285
        %v294 = vcombine.high %v269, %v285
        %v296 = vunpack.c.l.s4 1934713408
        %v297 = vunpack.c.0.s8 %v296
        %v298 = vlaneseq
        %v299 = vshrl.u32 %v298, 7
        %v300 = vsub.s32 %v297, %v299
        %v301 = vrot.slane %v293, %v300
        %v303 = vunpack.c.l.s4 1934713408
        %v304 = vunpack.c.0.s8 %v303
        %v305 = vlaneseq
        %v306 = vshrl.u32 %v305, 7
        %v307 = vsub.s32 %v304, %v306
        %v308 = vrot.slane %v294, %v307
        %v309 = vcombine.low %v276, %v292
        %v310 = vcombine.high %v276, %v292
        %v312 = vunpack.c.l.s4 1934713408
        %v313 = vunpack.c.0.s8 %v312
        %v314 = vlaneseq
        %v315 = vshrl.u32 %v314, 7
        %v316 = vsub.s32 %v313, %v315
        %v317 = vrot.slane %v309, %v316
        %v319 = vunpack.c.l.s4 1934713408
        %v320 = vunpack.c.0.s8 %v319
        %v321 = vlaneseq
        %v322 = vshrl.u32 %v321, 7
        %v323 = vsub.s32 %v320, %v322
        %v324 = vrot.slane %v310, %v323
        %v325 = vcombine.high %v301, 0.0
        %v326 = vcombine.high %v308, 0.0
        %v327 = vcombine.high %v317, 0.0
        %v328 = vcombine.high %v324, 0.0
        %v329 = vcombine.low %v254, %v258
        %v330 = vcombine.high %v254, %v258
        %v332 = vunpack.c.l.s4 1983009808
        %v333 = vunpack.c.0.s8 %v332
        %v334 = vlaneseq
        %v335 = vshrl.u32 %v334, 7
        %v336 = vsub.s32 %v333, %v335
        %v337 = vrot.slane %v329, %v336
        %v339 = vunpack.c.l.s4 1983009808
        %v340 = vunpack.c.0.s8 %v339
        %v341 = vlaneseq
        %v342 = vshrl.u32 %v341, 7
        %v343 = vsub.s32 %v340, %v342
        %v344 = vrot.slane %v330, %v343
        %v345 = vcombine.low %v256, %v260
        %v346 = vcombine.high %v256, %v260
        %v348 = vunpack.c.l.s4 1983009808
        %v349 = vunpack.c.0.s8 %v348
        %v350 = vlaneseq
        %v351 = vshrl.u32 %v350, 7
        %v352 = vsub.s32 %v349, %v351
        %v353 = vrot.slane %v345, %v352
        %v355 = vunpack.c.l.s4 1983009808
        %v356 = vunpack.c.0.s8 %v355
        %v357 = vlaneseq
        %v358 = vshrl.u32 %v357, 7
        %v359 = vsub.s32 %v356, %v358
        %v360 = vrot.slane %v346, %v359
        %v361 = vcombine.low %v337, %v353
        %v362 = vcombine.high %v337, %v353
        %v364 = vunpack.c.l.s4 1934713408
        %v365 = vunpack.c.0.s8 %v364
        %v366 = vlaneseq
        %v367 = vshrl.u32 %v366, 7
        %v368 = vsub.s32 %v365, %v367
        %v369 = vrot.slane %v361, %v368
        %v371 = vunpack.c.l.s4 1934713408
        %v372 = vunpack.c.0.s8 %v371
        %v373 = vlaneseq
        %v374 = vshrl.u32 %v373, 7
        %v375 = vsub.s32 %v372, %v374
        %v376 = vrot.slane %v362, %v375
        %v377 = vcombine.low %v344, %v360
        %v378 = vcombine.high %v344, %v360
        %v380 = vunpack.c.l.s4 1934713408
        %v381 = vunpack.c.0.s8 %v380
        %v382 = vlaneseq
        %v383 = vshrl.u32 %v382, 7
        %v384 = vsub.s32 %v381, %v383
        %v385 = vrot.slane %v377, %v384
        %v387 = vunpack.c.l.s4 1934713408
        %v388 = vunpack.c.0.s8 %v387
        %v389 = vlaneseq
        %v390 = vshrl.u32 %v389, 7
        %v391 = vsub.s32 %v388, %v390
        %v392 = vrot.slane %v378, %v391
        %v393 = vcombine.high %v369, 0.0
        %v394 = vcombine.high %v376, 0.0
        %v395 = vcombine.high %v385, 0.0
        %v396 = vcombine.high %v392, 0.0
        %398 = vrot.lane.b32.xlu0 %v325, 16
        %v399 = vpop.permute.xlu0 %398
        %402 = vrot.lane.b32.xlu0 %v308, 32
        %v403 = vpop.permute.xlu0 %402
        %406 = vrot.lane.b32.xlu0 %v326, 48
        %v407 = vpop.permute.xlu0 %406
        %410 = vrot.lane.b32.xlu0 %v317, 64
        %v411 = vpop.permute.xlu0 %410
        %414 = vrot.lane.b32.xlu0 %v327, 80
        %v415 = vpop.permute.xlu0 %414
        %418 = vrot.lane.b32.xlu0 %v324, 96
        %v419 = vpop.permute.xlu0 %418
        %422 = vrot.lane.b32.xlu0 %v328, 112
        %v423 = vpop.permute.xlu0 %422
        %426 = vrot.lane.b32.xlu0 %v393, 16
        %v427 = vpop.permute.xlu0 %426
        %430 = vrot.lane.b32.xlu0 %v376, 32
        %v431 = vpop.permute.xlu0 %430
        %434 = vrot.lane.b32.xlu0 %v394, 48
        %v435 = vpop.permute.xlu0 %434
        %438 = vrot.lane.b32.xlu0 %v385, 64
        %v439 = vpop.permute.xlu0 %438
        %442 = vrot.lane.b32.xlu0 %v395, 80
        %v443 = vpop.permute.xlu0 %442
        %446 = vrot.lane.b32.xlu0 %v392, 96
        %v447 = vpop.permute.xlu0 %446
        %450 = vrot.lane.b32.xlu0 %v396, 112
        %v451 = vpop.permute.xlu0 %450
        %vm453 = vcmask 130048
        %v454 = vsel %vm453, %v301, %v399
        %vm455 = vcmask 261120
        %v456 = vsel %vm455, %v454, %v403
        %vm457 = vcmask 392192
        %v458 = vsel %vm457, %v456, %v407
        %vm459 = vcmask 523264
        %v460 = vsel %vm459, %v458, %v411
        %vm461 = vcmask 654336
        %v462 = vsel %vm461, %v460, %v415
        %vm463 = vcmask 785408
        %v464 = vsel %vm463, %v462, %v419
        %vm465 = vcmask 916480
        %v466 = vsel %vm465, %v464, %v423
        %v467 = vsel %vm453, %v369, %v427
        %v468 = vsel %vm455, %v467, %v431
        %v469 = vsel %vm457, %v468, %v435
        %v470 = vsel %vm459, %v469, %v439
        %v471 = vsel %vm461, %v470, %v443
        %v472 = vsel %vm463, %v471, %v447
        %v473 = vsel %vm465, %v472, %v451
        %474 = vst [vmem:[#allocation3] sm:$0xf] %v466
        %475 = vst [vmem:[#allocation3 + $0x8] sm:$0xf] %v473
        %v476 = vld [vmem:[#allocation2] sm:$0xff]
        %v477 = vld [vmem:[#allocation2 + $0x8] sm:$0xff]
        %v478 = vld [vmem:[#allocation2 + $0x18] sm:$0xff]
        %v479 = vld [vmem:[#allocation2 + $0x20] sm:$0xff]
        %v480 = vld [vmem:[#allocation2 + $0x30] sm:$0xff]
        %v481 = vld [vmem:[#allocation2 + $0x38] sm:$0xff]
        %v482 = vld [vmem:[#allocation2 + $0x48] sm:$0xff]
        %v483 = vld [vmem:[#allocation2 + $0x50] sm:$0xff]
        %492 = vrot.lane.b32.xlu0 %v476, 127
        %v493 = vpop.permute.xlu0 %492
        %494 = vrot.lane.b32.xlu0 %v477, 127
        %v495 = vpop.permute.xlu0 %494
        %496 = vrot.lane.b32.xlu0 %v478, 127
        %v497 = vpop.permute.xlu0 %496
        %498 = vrot.lane.b32.xlu0 %v479, 127
        %v499 = vpop.permute.xlu0 %498
        %500 = vrot.lane.b32.xlu0 %v480, 127
        %v501 = vpop.permute.xlu0 %500
        %502 = vrot.lane.b32.xlu0 %v481, 127
        %v503 = vpop.permute.xlu0 %502
        %504 = vrot.lane.b32.xlu0 %v482, 127
        %v505 = vpop.permute.xlu0 %504
        %506 = vrot.lane.b32.xlu0 %v483, 127
        %v507 = vpop.permute.xlu0 %506
        %v516 = vcombine.low %v493, %v501
        %v517 = vcombine.high %v493, %v501
        %v519 = vunpack.c.l.s4 1983009808
        %v520 = vunpack.c.0.s8 %v519
        %v521 = vlaneseq
        %v522 = vshrl.u32 %v521, 7
        %v523 = vsub.s32 %v520, %v522
        %v524 = vrot.slane %v516, %v523
        %v526 = vunpack.c.l.s4 1983009808
        %v527 = vunpack.c.0.s8 %v526
        %v528 = vlaneseq
        %v529 = vshrl.u32 %v528, 7
        %v530 = vsub.s32 %v527, %v529
        %v531 = vrot.slane %v517, %v530
        %v532 = vcombine.low %v497, %v505
        %v533 = vcombine.high %v497, %v505
        %v535 = vunpack.c.l.s4 1983009808
        %v536 = vunpack.c.0.s8 %v535
        %v537 = vlaneseq
        %v538 = vshrl.u32 %v537, 7
        %v539 = vsub.s32 %v536, %v538
        %v540 = vrot.slane %v532, %v539
        %v542 = vunpack.c.l.s4 1983009808
        %v543 = vunpack.c.0.s8 %v542
        %v544 = vlaneseq
        %v545 = vshrl.u32 %v544, 7
        %v546 = vsub.s32 %v543, %v545
        %v547 = vrot.slane %v533, %v546
        %v548 = vcombine.low %v524, %v540
        %v549 = vcombine.high %v524, %v540
        %v551 = vunpack.c.l.s4 1934713408
        %v552 = vunpack.c.0.s8 %v551
        %v553 = vlaneseq
        %v554 = vshrl.u32 %v553, 7
        %v555 = vsub.s32 %v552, %v554
        %v556 = vrot.slane %v548, %v555
        %v558 = vunpack.c.l.s4 1934713408
        %v559 = vunpack.c.0.s8 %v558
        %v560 = vlaneseq
        %v561 = vshrl.u32 %v560, 7
        %v562 = vsub.s32 %v559, %v561
        %v563 = vrot.slane %v549, %v562
        %v564 = vcombine.low %v531, %v547
        %v565 = vcombine.high %v531, %v547
        %v567 = vunpack.c.l.s4 1934713408
        %v568 = vunpack.c.0.s8 %v567
        %v569 = vlaneseq
        %v570 = vshrl.u32 %v569, 7
        %v571 = vsub.s32 %v568, %v570
        %v572 = vrot.slane %v564, %v571
        %v574 = vunpack.c.l.s4 1934713408
        %v575 = vunpack.c.0.s8 %v574
        %v576 = vlaneseq
        %v577 = vshrl.u32 %v576, 7
        %v578 = vsub.s32 %v575, %v577
        %v579 = vrot.slane %v565, %v578
        %v580 = vcombine.high %v556, 0.0
        %v581 = vcombine.high %v563, 0.0
        %v582 = vcombine.high %v572, 0.0
        %v583 = vcombine.high %v579, 0.0
        %v584 = vcombine.low %v495, %v503
        %v585 = vcombine.high %v495, %v503
        %v587 = vunpack.c.l.s4 1983009808
        %v588 = vunpack.c.0.s8 %v587
        %v589 = vlaneseq
        %v590 = vshrl.u32 %v589, 7
        %v591 = vsub.s32 %v588, %v590
        %v592 = vrot.slane %v584, %v591
        %v594 = vunpack.c.l.s4 1983009808
        %v595 = vunpack.c.0.s8 %v594
        %v596 = vlaneseq
        %v597 = vshrl.u32 %v596, 7
        %v598 = vsub.s32 %v595, %v597
        %v599 = vrot.slane %v585, %v598
        %v600 = vcombine.low %v499, %v507
        %v601 = vcombine.high %v499, %v507
        %v603 = vunpack.c.l.s4 1983009808
        %v604 = vunpack.c.0.s8 %v603
        %v605 = vlaneseq
        %v606 = vshrl.u32 %v605, 7
        %v607 = vsub.s32 %v604, %v606
        %v608 = vrot.slane %v600, %v607
        %v610 = vunpack.c.l.s4 1983009808
        %v611 = vunpack.c.0.s8 %v610
        %v612 = vlaneseq
        %v613 = vshrl.u32 %v612, 7
        %v614 = vsub.s32 %v611, %v613
        %v615 = vrot.slane %v601, %v614
        %v616 = vcombine.low %v592, %v608
        %v617 = vcombine.high %v592, %v608
        %v619 = vunpack.c.l.s4 1934713408
        %v620 = vunpack.c.0.s8 %v619
        %v621 = vlaneseq
        %v622 = vshrl.u32 %v621, 7
        %v623 = vsub.s32 %v620, %v622
        %v624 = vrot.slane %v616, %v623
        %v626 = vunpack.c.l.s4 1934713408
        %v627 = vunpack.c.0.s8 %v626
        %v628 = vlaneseq
        %v629 = vshrl.u32 %v628, 7
        %v630 = vsub.s32 %v627, %v629
        %v631 = vrot.slane %v617, %v630
        %v632 = vcombine.low %v599, %v615
        %v633 = vcombine.high %v599, %v615
        %v635 = vunpack.c.l.s4 1934713408
        %v636 = vunpack.c.0.s8 %v635
        %v637 = vlaneseq
        %v638 = vshrl.u32 %v637, 7
        %v639 = vsub.s32 %v636, %v638
        %v640 = vrot.slane %v632, %v639
        %v642 = vunpack.c.l.s4 1934713408
        %v643 = vunpack.c.0.s8 %v642
        %v644 = vlaneseq
        %v645 = vshrl.u32 %v644, 7
        %v646 = vsub.s32 %v643, %v645
        %v647 = vrot.slane %v633, %v646
        %v648 = vcombine.high %v624, 0.0
        %v649 = vcombine.high %v631, 0.0
        %v650 = vcombine.high %v640, 0.0
        %v651 = vcombine.high %v647, 0.0
        %653 = vrot.lane.b32.xlu0 %v580, 16
        %v654 = vpop.permute.xlu0 %653
        %657 = vrot.lane.b32.xlu0 %v563, 32
        %v658 = vpop.permute.xlu0 %657
        %661 = vrot.lane.b32.xlu0 %v581, 48
        %v662 = vpop.permute.xlu0 %661
        %665 = vrot.lane.b32.xlu0 %v572, 64
        %v666 = vpop.permute.xlu0 %665
        %669 = vrot.lane.b32.xlu0 %v582, 80
        %v670 = vpop.permute.xlu0 %669
        %673 = vrot.lane.b32.xlu0 %v579, 96
        %v674 = vpop.permute.xlu0 %673
        %677 = vrot.lane.b32.xlu0 %v583, 112
        %v678 = vpop.permute.xlu0 %677
        %681 = vrot.lane.b32.xlu0 %v648, 16
        %v682 = vpop.permute.xlu0 %681
        %685 = vrot.lane.b32.xlu0 %v631, 32
        %v686 = vpop.permute.xlu0 %685
        %689 = vrot.lane.b32.xlu0 %v649, 48
        %v690 = vpop.permute.xlu0 %689
        %693 = vrot.lane.b32.xlu0 %v640, 64
        %v694 = vpop.permute.xlu0 %693
        %697 = vrot.lane.b32.xlu0 %v650, 80
        %v698 = vpop.permute.xlu0 %697
        %701 = vrot.lane.b32.xlu0 %v647, 96
        %v702 = vpop.permute.xlu0 %701
        %705 = vrot.lane.b32.xlu0 %v651, 112
        %v706 = vpop.permute.xlu0 %705
        %v708 = vsel %vm453, %v556, %v654
        %v709 = vsel %vm455, %v708, %v658
        %v710 = vsel %vm457, %v709, %v662
        %v711 = vsel %vm459, %v710, %v666
        %v712 = vsel %vm461, %v711, %v670
        %v713 = vsel %vm463, %v712, %v674
        %v714 = vsel %vm465, %v713, %v678
        %v715 = vsel %vm453, %v624, %v682
        %v716 = vsel %vm455, %v715, %v686
        %v717 = vsel %vm457, %v716, %v690
        %v718 = vsel %vm459, %v717, %v694
        %v719 = vsel %vm461, %v718, %v698
        %v720 = vsel %vm463, %v719, %v702
        %v721 = vsel %vm465, %v720, %v706
        %v724 = vrot.slane %v714, 4
        %v725 = vrot.slane %v721, 4
        %728 = vst [vmem:[#allocation3] sm:$0xf0] %v724
        %729 = vst [vmem:[#allocation3 + $0x8] sm:$0xf0] %v725
        %v730 = vld [vmem:[#allocation2] sm:$0xff]
        %v731 = vld [vmem:[#allocation2 + $0x8] sm:$0xff]
        %v732 = vld [vmem:[#allocation2 + $0x18] sm:$0xff]
        %v733 = vld [vmem:[#allocation2 + $0x20] sm:$0xff]
        %v734 = vld [vmem:[#allocation2 + $0x30] sm:$0xff]
        %v735 = vld [vmem:[#allocation2 + $0x38] sm:$0xff]
        %v736 = vld [vmem:[#allocation2 + $0x48] sm:$0xff]
        %v737 = vld [vmem:[#allocation2 + $0x50] sm:$0xff]
        %746 = vrot.lane.b32.xlu0 %v730, 126
        %v747 = vpop.permute.xlu0 %746
        %748 = vrot.lane.b32.xlu0 %v731, 126
        %v749 = vpop.permute.xlu0 %748
        %750 = vrot.lane.b32.xlu0 %v732, 126
        %v751 = vpop.permute.xlu0 %750
        %752 = vrot.lane.b32.xlu0 %v733, 126
        %v753 = vpop.permute.xlu0 %752
        %754 = vrot.lane.b32.xlu0 %v734, 126
        %v755 = vpop.permute.xlu0 %754
        %756 = vrot.lane.b32.xlu0 %v735, 126
        %v757 = vpop.permute.xlu0 %756
        %758 = vrot.lane.b32.xlu0 %v736, 126
        %v759 = vpop.permute.xlu0 %758
        %760 = vrot.lane.b32.xlu0 %v737, 126
        %v761 = vpop.permute.xlu0 %760
        %v770 = vcombine.low %v747, %v755
        %v771 = vcombine.high %v747, %v755
        %v773 = vunpack.c.l.s4 1983009808
        %v774 = vunpack.c.0.s8 %v773
        %v775 = vlaneseq
        %v776 = vshrl.u32 %v775, 7
        %v777 = vsub.s32 %v774, %v776
        %v778 = vrot.slane %v770, %v777
        %v780 = vunpack.c.l.s4 1983009808
        %v781 = vunpack.c.0.s8 %v780
        %v782 = vlaneseq
        %v783 = vshrl.u32 %v782, 7
        %v784 = vsub.s32 %v781, %v783
        %v785 = vrot.slane %v771, %v784
        %v786 = vcombine.low %v751, %v759
        %v787 = vcombine.high %v751, %v759
        %v789 = vunpack.c.l.s4 1983009808
        %v790 = vunpack.c.0.s8 %v789
        %v791 = vlaneseq
        %v792 = vshrl.u32 %v791, 7
        %v793 = vsub.s32 %v790, %v792
        %v794 = vrot.slane %v786, %v793
        %v796 = vunpack.c.l.s4 1983009808
        %v797 = vunpack.c.0.s8 %v796
        %v798 = vlaneseq
        %v799 = vshrl.u32 %v798, 7
        %v800 = vsub.s32 %v797, %v799
        %v801 = vrot.slane %v787, %v800
        %v802 = vcombine.low %v778, %v794
        %v803 = vcombine.high %v778, %v794
        %v805 = vunpack.c.l.s4 1934713408
        %v806 = vunpack.c.0.s8 %v805
        %v807 = vlaneseq
        %v808 = vshrl.u32 %v807, 7
        %v809 = vsub.s32 %v806, %v808
        %v810 = vrot.slane %v802, %v809
        %v812 = vunpack.c.l.s4 1934713408
        %v813 = vunpack.c.0.s8 %v812
        %v814 = vlaneseq
        %v815 = vshrl.u32 %v814, 7
        %v816 = vsub.s32 %v813, %v815
        %v817 = vrot.slane %v803, %v816
        %v818 = vcombine.low %v785, %v801
        %v819 = vcombine.high %v785, %v801
        %v821 = vunpack.c.l.s4 1934713408
        %v822 = vunpack.c.0.s8 %v821
        %v823 = vlaneseq
        %v824 = vshrl.u32 %v823, 7
        %v825 = vsub.s32 %v822, %v824
        %v826 = vrot.slane %v818, %v825
        %v828 = vunpack.c.l.s4 1934713408
        %v829 = vunpack.c.0.s8 %v828
        %v830 = vlaneseq
        %v831 = vshrl.u32 %v830, 7
        %v832 = vsub.s32 %v829, %v831
        %v833 = vrot.slane %v819, %v832
        %v834 = vcombine.high %v810, 0.0
        %v835 = vcombine.high %v817, 0.0
        %v836 = vcombine.high %v826, 0.0
        %v837 = vcombine.high %v833, 0.0
        %v838 = vcombine.low %v749, %v757
        %v839 = vcombine.high %v749, %v757
        %v841 = vunpack.c.l.s4 1983009808
        %v842 = vunpack.c.0.s8 %v841
        %v843 = vlaneseq
        %v844 = vshrl.u32 %v843, 7
        %v845 = vsub.s32 %v842, %v844
        %v846 = vrot.slane %v838, %v845
        %v848 = vunpack.c.l.s4 1983009808
        %v849 = vunpack.c.0.s8 %v848
        %v850 = vlaneseq
        %v851 = vshrl.u32 %v850, 7
        %v852 = vsub.s32 %v849, %v851
        %v853 = vrot.slane %v839, %v852
        %v854 = vcombine.low %v753, %v761
        %v855 = vcombine.high %v753, %v761
        %v857 = vunpack.c.l.s4 1983009808
        %v858 = vunpack.c.0.s8 %v857
        %v859 = vlaneseq
        %v860 = vshrl.u32 %v859, 7
        %v861 = vsub.s32 %v858, %v860
        %v862 = vrot.slane %v854, %v861
        %v864 = vunpack.c.l.s4 1983009808
        %v865 = vunpack.c.0.s8 %v864
        %v866 = vlaneseq
        %v867 = vshrl.u32 %v866, 7
        %v868 = vsub.s32 %v865, %v867
        %v869 = vrot.slane %v855, %v868
        %v870 = vcombine.low %v846, %v862
        %v871 = vcombine.high %v846, %v862
        %v873 = vunpack.c.l.s4 1934713408
        %v874 = vunpack.c.0.s8 %v873
        %v875 = vlaneseq
        %v876 = vshrl.u32 %v875, 7
        %v877 = vsub.s32 %v874, %v876
        %v878 = vrot.slane %v870, %v877
        %v880 = vunpack.c.l.s4 1934713408
        %v881 = vunpack.c.0.s8 %v880
        %v882 = vlaneseq
        %v883 = vshrl.u32 %v882, 7
        %v884 = vsub.s32 %v881, %v883
        %v885 = vrot.slane %v871, %v884
        %v886 = vcombine.low %v853, %v869
        %v887 = vcombine.high %v853, %v869
        %v889 = vunpack.c.l.s4 1934713408
        %v890 = vunpack.c.0.s8 %v889
        %v891 = vlaneseq
        %v892 = vshrl.u32 %v891, 7
        %v893 = vsub.s32 %v890, %v892
        %v894 = vrot.slane %v886, %v893
        %v896 = vunpack.c.l.s4 1934713408
        %v897 = vunpack.c.0.s8 %v896
        %v898 = vlaneseq
        %v899 = vshrl.u32 %v898, 7
        %v900 = vsub.s32 %v897, %v899
        %v901 = vrot.slane %v887, %v900
        %v902 = vcombine.high %v878, 0.0
        %v903 = vcombine.high %v885, 0.0
        %v904 = vcombine.high %v894, 0.0
        %v905 = vcombine.high %v901, 0.0
        %907 = vrot.lane.b32.xlu0 %v834, 16
        %v908 = vpop.permute.xlu0 %907
        %911 = vrot.lane.b32.xlu0 %v817, 32
        %v912 = vpop.permute.xlu0 %911
        %915 = vrot.lane.b32.xlu0 %v835, 48
        %v916 = vpop.permute.xlu0 %915
        %919 = vrot.lane.b32.xlu0 %v826, 64
        %v920 = vpop.permute.xlu0 %919
        %923 = vrot.lane.b32.xlu0 %v836, 80
        %v924 = vpop.permute.xlu0 %923
        %927 = vrot.lane.b32.xlu0 %v833, 96
        %v928 = vpop.permute.xlu0 %927
        %931 = vrot.lane.b32.xlu0 %v837, 112
        %v932 = vpop.permute.xlu0 %931
        %935 = vrot.lane.b32.xlu0 %v902, 16
        %v936 = vpop.permute.xlu0 %935
        %939 = vrot.lane.b32.xlu0 %v885, 32
        %v940 = vpop.permute.xlu0 %939
        %943 = vrot.lane.b32.xlu0 %v903, 48
        %v944 = vpop.permute.xlu0 %943
        %947 = vrot.lane.b32.xlu0 %v894, 64
        %v948 = vpop.permute.xlu0 %947
        %951 = vrot.lane.b32.xlu0 %v904, 80
        %v952 = vpop.permute.xlu0 %951
        %955 = vrot.lane.b32.xlu0 %v901, 96
        %v956 = vpop.permute.xlu0 %955
        %959 = vrot.lane.b32.xlu0 %v905, 112
        %v960 = vpop.permute.xlu0 %959
        %v962 = vsel %vm453, %v810, %v908
        %v963 = vsel %vm455, %v962, %v912
        %v964 = vsel %vm457, %v963, %v916
        %v965 = vsel %vm459, %v964, %v920
        %v966 = vsel %vm461, %v965, %v924
        %v967 = vsel %vm463, %v966, %v928
        %v968 = vsel %vm465, %v967, %v932
        %v969 = vsel %vm453, %v878, %v936
        %v970 = vsel %vm455, %v969, %v940
        %v971 = vsel %vm457, %v970, %v944
        %v972 = vsel %vm459, %v971, %v948
        %v973 = vsel %vm461, %v972, %v952
        %v974 = vsel %vm463, %v973, %v956
        %v975 = vsel %vm465, %v974, %v960
        %976 = vst [vmem:[#allocation3 + $0x10] sm:$0xf] %v968
        %977 = vst [vmem:[#allocation3 + $0x18] sm:$0xf] %v975
        %v978 = vld [vmem:[#allocation2 + $0x1] sm:$0xff]
        %v979 = vld [vmem:[#allocation2 + $0x9] sm:$0xff]
        %v980 = vld [vmem:[#allocation2 + $0x19] sm:$0xff]
        %v981 = vld [vmem:[#allocation2 + $0x21] sm:$0xff]
        %v982 = vld [vmem:[#allocation2 + $0x31] sm:$0xff]
        %v983 = vld [vmem:[#allocation2 + $0x39] sm:$0xff]
        %v984 = vld [vmem:[#allocation2 + $0x49] sm:$0xff]
        %v985 = vld [vmem:[#allocation2 + $0x51] sm:$0xff]
        %v986 = vcombine.low %v978, %v982
        %v987 = vcombine.high %v978, %v982
        %v989 = vunpack.c.l.s4 1983009808
        %v990 = vunpack.c.0.s8 %v989
        %v991 = vlaneseq
        %v992 = vshrl.u32 %v991, 7
        %v993 = vsub.s32 %v990, %v992
        %v994 = vrot.slane %v986, %v993
        %v996 = vunpack.c.l.s4 1983009808
        %v997 = vunpack.c.0.s8 %v996
        %v998 = vlaneseq
        %v999 = vshrl.u32 %v998, 7
        %v1000 = vsub.s32 %v997, %v999
        %v1001 = vrot.slane %v987, %v1000
        %v1002 = vcombine.low %v980, %v984
        %v1003 = vcombine.high %v980, %v984
        %v1005 = vunpack.c.l.s4 1983009808
        %v1006 = vunpack.c.0.s8 %v1005
        %v1007 = vlaneseq
        %v1008 = vshrl.u32 %v1007, 7
        %v1009 = vsub.s32 %v1006, %v1008
        %v1010 = vrot.slane %v1002, %v1009
        %v1012 = vunpack.c.l.s4 1983009808
        %v1013 = vunpack.c.0.s8 %v1012
        %v1014 = vlaneseq
        %v1015 = vshrl.u32 %v1014, 7
        %v1016 = vsub.s32 %v1013, %v1015
        %v1017 = vrot.slane %v1003, %v1016
        %v1018 = vcombine.low %v994, %v1010
        %v1019 = vcombine.high %v994, %v1010
        %v1021 = vunpack.c.l.s4 1934713408
        %v1022 = vunpack.c.0.s8 %v1021
        %v1023 = vlaneseq
        %v1024 = vshrl.u32 %v1023, 7
        %v1025 = vsub.s32 %v1022, %v1024
        %v1026 = vrot.slane %v1018, %v1025
        %v1028 = vunpack.c.l.s4 1934713408
        %v1029 = vunpack.c.0.s8 %v1028
        %v1030 = vlaneseq
        %v1031 = vshrl.u32 %v1030, 7
        %v1032 = vsub.s32 %v1029, %v1031
        %v1033 = vrot.slane %v1019, %v1032
        %v1034 = vcombine.low %v1001, %v1017
        %v1035 = vcombine.high %v1001, %v1017
        %v1037 = vunpack.c.l.s4 1934713408
        %v1038 = vunpack.c.0.s8 %v1037
        %v1039 = vlaneseq
        %v1040 = vshrl.u32 %v1039, 7
        %v1041 = vsub.s32 %v1038, %v1040
        %v1042 = vrot.slane %v1034, %v1041
        %v1044 = vunpack.c.l.s4 1934713408
        %v1045 = vunpack.c.0.s8 %v1044
        %v1046 = vlaneseq
        %v1047 = vshrl.u32 %v1046, 7
        %v1048 = vsub.s32 %v1045, %v1047
        %v1049 = vrot.slane %v1035, %v1048
        %v1050 = vcombine.high %v1026, 0.0
        %v1051 = vcombine.high %v1033, 0.0
        %v1052 = vcombine.high %v1042, 0.0
        %v1053 = vcombine.high %v1049, 0.0
        %v1054 = vcombine.low %v979, %v983
        %v1055 = vcombine.high %v979, %v983
        %v1057 = vunpack.c.l.s4 1983009808
        %v1058 = vunpack.c.0.s8 %v1057
        %v1059 = vlaneseq
        %v1060 = vshrl.u32 %v1059, 7
        %v1061 = vsub.s32 %v1058, %v1060
        %v1062 = vrot.slane %v1054, %v1061
        %v1064 = vunpack.c.l.s4 1983009808
        %v1065 = vunpack.c.0.s8 %v1064
        %v1066 = vlaneseq
        %v1067 = vshrl.u32 %v1066, 7
        %v1068 = vsub.s32 %v1065, %v1067
        %v1069 = vrot.slane %v1055, %v1068
        %v1070 = vcombine.low %v981, %v985
        %v1071 = vcombine.high %v981, %v985
        %v1073 = vunpack.c.l.s4 1983009808
        %v1074 = vunpack.c.0.s8 %v1073
        %v1075 = vlaneseq
        %v1076 = vshrl.u32 %v1075, 7
        %v1077 = vsub.s32 %v1074, %v1076
        %v1078 = vrot.slane %v1070, %v1077
        %v1080 = vunpack.c.l.s4 1983009808
        %v1081 = vunpack.c.0.s8 %v1080
        %v1082 = vlaneseq
        %v1083 = vshrl.u32 %v1082, 7
        %v1084 = vsub.s32 %v1081, %v1083
        %v1085 = vrot.slane %v1071, %v1084
        %v1086 = vcombine.low %v1062, %v1078
        %v1087 = vcombine.high %v1062, %v1078
        %v1089 = vunpack.c.l.s4 1934713408
        %v1090 = vunpack.c.0.s8 %v1089
        %v1091 = vlaneseq
        %v1092 = vshrl.u32 %v1091, 7
        %v1093 = vsub.s32 %v1090, %v1092
        %v1094 = vrot.slane %v1086, %v1093
        %v1096 = vunpack.c.l.s4 1934713408
        %v1097 = vunpack.c.0.s8 %v1096
        %v1098 = vlaneseq
        %v1099 = vshrl.u32 %v1098, 7
        %v1100 = vsub.s32 %v1097, %v1099
        %v1101 = vrot.slane %v1087, %v1100
        %v1102 = vcombine.low %v1069, %v1085
        %v1103 = vcombine.high %v1069, %v1085
        %v1105 = vunpack.c.l.s4 1934713408
        %v1106 = vunpack.c.0.s8 %v1105
        %v1107 = vlaneseq
        %v1108 = vshrl.u32 %v1107, 7
        %v1109 = vsub.s32 %v1106, %v1108
        %v1110 = vrot.slane %v1102, %v1109
        %v1112 = vunpack.c.l.s4 1934713408
        %v1113 = vunpack.c.0.s8 %v1112
        %v1114 = vlaneseq
        %v1115 = vshrl.u32 %v1114, 7
        %v1116 = vsub.s32 %v1113, %v1115
        %v1117 = vrot.slane %v1103, %v1116
        %v1118 = vcombine.high %v1094, 0.0
        %v1119 = vcombine.high %v1101, 0.0
        %v1120 = vcombine.high %v1110, 0.0
        %v1121 = vcombine.high %v1117, 0.0
        %1123 = vrot.lane.b32.xlu0 %v1050, 16
        %v1124 = vpop.permute.xlu0 %1123
        %1127 = vrot.lane.b32.xlu0 %v1033, 32
        %v1128 = vpop.permute.xlu0 %1127
        %1131 = vrot.lane.b32.xlu0 %v1051, 48
        %v1132 = vpop.permute.xlu0 %1131
        %1135 = vrot.lane.b32.xlu0 %v1042, 64
        %v1136 = vpop.permute.xlu0 %1135
        %1139 = vrot.lane.b32.xlu0 %v1052, 80
        %v1140 = vpop.permute.xlu0 %1139
        %1143 = vrot.lane.b32.xlu0 %v1049, 96
        %v1144 = vpop.permute.xlu0 %1143
        %1147 = vrot.lane.b32.xlu0 %v1053, 112
        %v1148 = vpop.permute.xlu0 %1147
        %1151 = vrot.lane.b32.xlu0 %v1118, 16
        %v1152 = vpop.permute.xlu0 %1151
        %1155 = vrot.lane.b32.xlu0 %v1101, 32
        %v1156 = vpop.permute.xlu0 %1155
        %1159 = vrot.lane.b32.xlu0 %v1119, 48
        %v1160 = vpop.permute.xlu0 %1159
        %1163 = vrot.lane.b32.xlu0 %v1110, 64
        %v1164 = vpop.permute.xlu0 %1163
        %1167 = vrot.lane.b32.xlu0 %v1120, 80
        %v1168 = vpop.permute.xlu0 %1167
        %1171 = vrot.lane.b32.xlu0 %v1117, 96
        %v1172 = vpop.permute.xlu0 %1171
        %1175 = vrot.lane.b32.xlu0 %v1121, 112
        %v1176 = vpop.permute.xlu0 %1175
        %v1178 = vsel %vm453, %v1026, %v1124
        %v1179 = vsel %vm455, %v1178, %v1128
        %v1180 = vsel %vm457, %v1179, %v1132
        %v1181 = vsel %vm459, %v1180, %v1136
        %v1182 = vsel %vm461, %v1181, %v1140
        %v1183 = vsel %vm463, %v1182, %v1144
        %v1184 = vsel %vm465, %v1183, %v1148
        %v1185 = vsel %vm453, %v1094, %v1152
        %v1186 = vsel %vm455, %v1185, %v1156
        %v1187 = vsel %vm457, %v1186, %v1160
        %v1188 = vsel %vm459, %v1187, %v1164
        %v1189 = vsel %vm461, %v1188, %v1168
        %v1190 = vsel %vm463, %v1189, %v1172
        %v1191 = vsel %vm465, %v1190, %v1176
        %v1194 = vrot.slane %v1184, 4
        %v1195 = vrot.slane %v1191, 4
        %1198 = vst [vmem:[#allocation3 + $0x10] sm:$0xf0] %v1194
        %1199 = vst [vmem:[#allocation3 + $0x18] sm:$0xf0] %v1195
        %v1200 = vld [vmem:[#allocation2 + $0x1] sm:$0xff]
        %v1201 = vld [vmem:[#allocation2 + $0x9] sm:$0xff]
        %v1202 = vld [vmem:[#allocation2 + $0x19] sm:$0xff]
        %v1203 = vld [vmem:[#allocation2 + $0x21] sm:$0xff]
        %v1204 = vld [vmem:[#allocation2 + $0x31] sm:$0xff]
        %v1205 = vld [vmem:[#allocation2 + $0x39] sm:$0xff]
        %v1206 = vld [vmem:[#allocation2 + $0x49] sm:$0xff]
        %v1207 = vld [vmem:[#allocation2 + $0x51] sm:$0xff]
        %1216 = vrot.lane.b32.xlu0 %v1200, 127
        %v1217 = vpop.permute.xlu0 %1216
        %1218 = vrot.lane.b32.xlu0 %v1201, 127
        %v1219 = vpop.permute.xlu0 %1218
        %1220 = vrot.lane.b32.xlu0 %v1202, 127
        %v1221 = vpop.permute.xlu0 %1220
        %1222 = vrot.lane.b32.xlu0 %v1203, 127
        %v1223 = vpop.permute.xlu0 %1222
        %1224 = vrot.lane.b32.xlu0 %v1204, 127
        %v1225 = vpop.permute.xlu0 %1224
        %1226 = vrot.lane.b32.xlu0 %v1205, 127
        %v1227 = vpop.permute.xlu0 %1226
        %1228 = vrot.lane.b32.xlu0 %v1206, 127
        %v1229 = vpop.permute.xlu0 %1228
        %1230 = vrot.lane.b32.xlu0 %v1207, 127
        %v1231 = vpop.permute.xlu0 %1230
        %v1240 = vcombine.low %v1217, %v1225
        %v1241 = vcombine.high %v1217, %v1225
        %v1243 = vunpack.c.l.s4 1983009808
        %v1244 = vunpack.c.0.s8 %v1243
        %v1245 = vlaneseq
        %v1246 = vshrl.u32 %v1245, 7
        %v1247 = vsub.s32 %v1244, %v1246
        %v1248 = vrot.slane %v1240, %v1247
        %v1250 = vunpack.c.l.s4 1983009808
        %v1251 = vunpack.c.0.s8 %v1250
        %v1252 = vlaneseq
        %v1253 = vshrl.u32 %v1252, 7
        %v1254 = vsub.s32 %v1251, %v1253
        %v1255 = vrot.slane %v1241, %v1254
        %v1256 = vcombine.low %v1221, %v1229
        %v1257 = vcombine.high %v1221, %v1229
        %v1259 = vunpack.c.l.s4 1983009808
        %v1260 = vunpack.c.0.s8 %v1259
        %v1261 = vlaneseq
        %v1262 = vshrl.u32 %v1261, 7
        %v1263 = vsub.s32 %v1260, %v1262
        %v1264 = vrot.slane %v1256, %v1263
        %v1266 = vunpack.c.l.s4 1983009808
        %v1267 = vunpack.c.0.s8 %v1266
        %v1268 = vlaneseq
        %v1269 = vshrl.u32 %v1268, 7
        %v1270 = vsub.s32 %v1267, %v1269
        %v1271 = vrot.slane %v1257, %v1270
        %v1272 = vcombine.low %v1248, %v1264
        %v1273 = vcombine.high %v1248, %v1264
        %v1275 = vunpack.c.l.s4 1934713408
        %v1276 = vunpack.c.0.s8 %v1275
        %v1277 = vlaneseq
        %v1278 = vshrl.u32 %v1277, 7
        %v1279 = vsub.s32 %v1276, %v1278
        %v1280 = vrot.slane %v1272, %v1279
        %v1282 = vunpack.c.l.s4 1934713408
        %v1283 = vunpack.c.0.s8 %v1282
        %v1284 = vlaneseq
        %v1285 = vshrl.u32 %v1284, 7
        %v1286 = vsub.s32 %v1283, %v1285
        %v1287 = vrot.slane %v1273, %v1286
        %v1288 = vcombine.low %v1255, %v1271
        %v1289 = vcombine.high %v1255, %v1271
        %v1291 = vunpack.c.l.s4 1934713408
        %v1292 = vunpack.c.0.s8 %v1291
        %v1293 = vlaneseq
        %v1294 = vshrl.u32 %v1293, 7
        %v1295 = vsub.s32 %v1292, %v1294
        %v1296 = vrot.slane %v1288, %v1295
        %v1298 = vunpack.c.l.s4 1934713408
        %v1299 = vunpack.c.0.s8 %v1298
        %v1300 = vlaneseq
        %v1301 = vshrl.u32 %v1300, 7
        %v1302 = vsub.s32 %v1299, %v1301
        %v1303 = vrot.slane %v1289, %v1302
        %v1304 = vcombine.high %v1280, 0.0
        %v1305 = vcombine.high %v1287, 0.0
        %v1306 = vcombine.high %v1296, 0.0
        %v1307 = vcombine.high %v1303, 0.0
        %v1308 = vcombine.low %v1219, %v1227
        %v1309 = vcombine.high %v1219, %v1227
        %v1311 = vunpack.c.l.s4 1983009808
        %v1312 = vunpack.c.0.s8 %v1311
        %v1313 = vlaneseq
        %v1314 = vshrl.u32 %v1313, 7
        %v1315 = vsub.s32 %v1312, %v1314
        %v1316 = vrot.slane %v1308, %v1315
        %v1318 = vunpack.c.l.s4 1983009808
        %v1319 = vunpack.c.0.s8 %v1318
        %v1320 = vlaneseq
        %v1321 = vshrl.u32 %v1320, 7
        %v1322 = vsub.s32 %v1319, %v1321
        %v1323 = vrot.slane %v1309, %v1322
        %v1324 = vcombine.low %v1223, %v1231
        %v1325 = vcombine.high %v1223, %v1231
        %v1327 = vunpack.c.l.s4 1983009808
        %v1328 = vunpack.c.0.s8 %v1327
        %v1329 = vlaneseq
        %v1330 = vshrl.u32 %v1329, 7
        %v1331 = vsub.s32 %v1328, %v1330
        %v1332 = vrot.slane %v1324, %v1331
        %v1334 = vunpack.c.l.s4 1983009808
        %v1335 = vunpack.c.0.s8 %v1334
        %v1336 = vlaneseq
        %v1337 = vshrl.u32 %v1336, 7
        %v1338 = vsub.s32 %v1335, %v1337
        %v1339 = vrot.slane %v1325, %v1338
        %v1340 = vcombine.low %v1316, %v1332
        %v1341 = vcombine.high %v1316, %v1332
        %v1343 = vunpack.c.l.s4 1934713408
        %v1344 = vunpack.c.0.s8 %v1343
        %v1345 = vlaneseq
        %v1346 = vshrl.u32 %v1345, 7
        %v1347 = vsub.s32 %v1344, %v1346
        %v1348 = vrot.slane %v1340, %v1347
        %v1350 = vunpack.c.l.s4 1934713408
        %v1351 = vunpack.c.0.s8 %v1350
        %v1352 = vlaneseq
        %v1353 = vshrl.u32 %v1352, 7
        %v1354 = vsub.s32 %v1351, %v1353
        %v1355 = vrot.slane %v1341, %v1354
        %v1356 = vcombine.low %v1323, %v1339
        %v1357 = vcombine.high %v1323, %v1339
        %v1359 = vunpack.c.l.s4 1934713408
        %v1360 = vunpack.c.0.s8 %v1359
        %v1361 = vlaneseq
        %v1362 = vshrl.u32 %v1361, 7
        %v1363 = vsub.s32 %v1360, %v1362
        %v1364 = vrot.slane %v1356, %v1363
        %v1366 = vunpack.c.l.s4 1934713408
        %v1367 = vunpack.c.0.s8 %v1366
        %v1368 = vlaneseq
        %v1369 = vshrl.u32 %v1368, 7
        %v1370 = vsub.s32 %v1367, %v1369
        %v1371 = vrot.slane %v1357, %v1370
        %v1372 = vcombine.high %v1348, 0.0
        %v1373 = vcombine.high %v1355, 0.0
        %v1374 = vcombine.high %v1364, 0.0
        %v1375 = vcombine.high %v1371, 0.0
        %1377 = vrot.lane.b32.xlu0 %v1304, 16
        %v1378 = vpop.permute.xlu0 %1377
        %1381 = vrot.lane.b32.xlu0 %v1287, 32
        %v1382 = vpop.permute.xlu0 %1381
        %1385 = vrot.lane.b32.xlu0 %v1305, 48
        %v1386 = vpop.permute.xlu0 %1385
        %1389 = vrot.lane.b32.xlu0 %v1296, 64
        %v1390 = vpop.permute.xlu0 %1389
        %1393 = vrot.lane.b32.xlu0 %v1306, 80
        %v1394 = vpop.permute.xlu0 %1393
        %1397 = vrot.lane.b32.xlu0 %v1303, 96
        %v1398 = vpop.permute.xlu0 %1397
        %1401 = vrot.lane.b32.xlu0 %v1307, 112
        %v1402 = vpop.permute.xlu0 %1401
        %1405 = vrot.lane.b32.xlu0 %v1372, 16
        %v1406 = vpop.permute.xlu0 %1405
        %1409 = vrot.lane.b32.xlu0 %v1355, 32
        %v1410 = vpop.permute.xlu0 %1409
        %1413 = vrot.lane.b32.xlu0 %v1373, 48
        %v1414 = vpop.permute.xlu0 %1413
        %1417 = vrot.lane.b32.xlu0 %v1364, 64
        %v1418 = vpop.permute.xlu0 %1417
        %1421 = vrot.lane.b32.xlu0 %v1374, 80
        %v1422 = vpop.permute.xlu0 %1421
        %1425 = vrot.lane.b32.xlu0 %v1371, 96
        %v1426 = vpop.permute.xlu0 %1425
        %1429 = vrot.lane.b32.xlu0 %v1375, 112
        %v1430 = vpop.permute.xlu0 %1429
        %v1432 = vsel %vm453, %v1280, %v1378
        %v1433 = vsel %vm455, %v1432, %v1382
        %v1434 = vsel %vm457, %v1433, %v1386
        %v1435 = vsel %vm459, %v1434, %v1390
        %v1436 = vsel %vm461, %v1435, %v1394
        %v1437 = vsel %vm463, %v1436, %v1398
        %v1438 = vsel %vm465, %v1437, %v1402
        %v1439 = vsel %vm453, %v1348, %v1406
        %v1440 = vsel %vm455, %v1439, %v1410
        %v1441 = vsel %vm457, %v1440, %v1414
        %v1442 = vsel %vm459, %v1441, %v1418
        %v1443 = vsel %vm461, %v1442, %v1422
        %v1444 = vsel %vm463, %v1443, %v1426
        %v1445 = vsel %vm465, %v1444, %v1430
        %1446 = vst [vmem:[#allocation3 + $0x20] sm:$0xf] %v1438
        %1447 = vst [vmem:[#allocation3 + $0x28] sm:$0xf] %v1445
        %v1448 = vld [vmem:[#allocation2 + $0x1] sm:$0xff]
        %v1449 = vld [vmem:[#allocation2 + $0x9] sm:$0xff]
        %v1450 = vld [vmem:[#allocation2 + $0x19] sm:$0xff]
        %v1451 = vld [vmem:[#allocation2 + $0x21] sm:$0xff]
        %v1452 = vld [vmem:[#allocation2 + $0x31] sm:$0xff]
        %v1453 = vld [vmem:[#allocation2 + $0x39] sm:$0xff]
        %v1454 = vld [vmem:[#allocation2 + $0x49] sm:$0xff]
        %v1455 = vld [vmem:[#allocation2 + $0x51] sm:$0xff]
        %1464 = vrot.lane.b32.xlu0 %v1448, 126
        %v1465 = vpop.permute.xlu0 %1464
        %1466 = vrot.lane.b32.xlu0 %v1449, 126
        %v1467 = vpop.permute.xlu0 %1466
        %1468 = vrot.lane.b32.xlu0 %v1450, 126
        %v1469 = vpop.permute.xlu0 %1468
        %1470 = vrot.lane.b32.xlu0 %v1451, 126
        %v1471 = vpop.permute.xlu0 %1470
        %1472 = vrot.lane.b32.xlu0 %v1452, 126
        %v1473 = vpop.permute.xlu0 %1472
        %1474 = vrot.lane.b32.xlu0 %v1453, 126
        %v1475 = vpop.permute.xlu0 %1474
        %1476 = vrot.lane.b32.xlu0 %v1454, 126
        %v1477 = vpop.permute.xlu0 %1476
        %1478 = vrot.lane.b32.xlu0 %v1455, 126
        %v1479 = vpop.permute.xlu0 %1478
        %v1488 = vcombine.low %v1465, %v1473
        %v1489 = vcombine.high %v1465, %v1473
        %v1491 = vunpack.c.l.s4 1983009808
        %v1492 = vunpack.c.0.s8 %v1491
        %v1493 = vlaneseq
        %v1494 = vshrl.u32 %v1493, 7
        %v1495 = vsub.s32 %v1492, %v1494
        %v1496 = vrot.slane %v1488, %v1495
        %v1498 = vunpack.c.l.s4 1983009808
        %v1499 = vunpack.c.0.s8 %v1498
        %v1500 = vlaneseq
        %v1501 = vshrl.u32 %v1500, 7
        %v1502 = vsub.s32 %v1499, %v1501
        %v1503 = vrot.slane %v1489, %v1502
        %v1504 = vcombine.low %v1469, %v1477
        %v1505 = vcombine.high %v1469, %v1477
        %v1507 = vunpack.c.l.s4 1983009808
        %v1508 = vunpack.c.0.s8 %v1507
        %v1509 = vlaneseq
        %v1510 = vshrl.u32 %v1509, 7
        %v1511 = vsub.s32 %v1508, %v1510
        %v1512 = vrot.slane %v1504, %v1511
        %v1514 = vunpack.c.l.s4 1983009808
        %v1515 = vunpack.c.0.s8 %v1514
        %v1516 = vlaneseq
        %v1517 = vshrl.u32 %v1516, 7
        %v1518 = vsub.s32 %v1515, %v1517
        %v1519 = vrot.slane %v1505, %v1518
        %v1520 = vcombine.low %v1496, %v1512
        %v1521 = vcombine.high %v1496, %v1512
        %v1523 = vunpack.c.l.s4 1934713408
        %v1524 = vunpack.c.0.s8 %v1523
        %v1525 = vlaneseq
        %v1526 = vshrl.u32 %v1525, 7
        %v1527 = vsub.s32 %v1524, %v1526
        %v1528 = vrot.slane %v1520, %v1527
        %v1530 = vunpack.c.l.s4 1934713408
        %v1531 = vunpack.c.0.s8 %v1530
        %v1532 = vlaneseq
        %v1533 = vshrl.u32 %v1532, 7
        %v1534 = vsub.s32 %v1531, %v1533
        %v1535 = vrot.slane %v1521, %v1534
        %v1536 = vcombine.low %v1503, %v1519
        %v1537 = vcombine.high %v1503, %v1519
        %v1539 = vunpack.c.l.s4 1934713408
        %v1540 = vunpack.c.0.s8 %v1539
        %v1541 = vlaneseq
        %v1542 = vshrl.u32 %v1541, 7
        %v1543 = vsub.s32 %v1540, %v1542
        %v1544 = vrot.slane %v1536, %v1543
        %v1546 = vunpack.c.l.s4 1934713408
        %v1547 = vunpack.c.0.s8 %v1546
        %v1548 = vlaneseq
        %v1549 = vshrl.u32 %v1548, 7
        %v1550 = vsub.s32 %v1547, %v1549
        %v1551 = vrot.slane %v1537, %v1550
        %v1552 = vcombine.high %v1528, 0.0
        %v1553 = vcombine.high %v1535, 0.0
        %v1554 = vcombine.high %v1544, 0.0
        %v1555 = vcombine.high %v1551, 0.0
        %v1556 = vcombine.low %v1467, %v1475
        %v1557 = vcombine.high %v1467, %v1475
        %v1559 = vunpack.c.l.s4 1983009808
        %v1560 = vunpack.c.0.s8 %v1559
        %v1561 = vlaneseq
        %v1562 = vshrl.u32 %v1561, 7
        %v1563 = vsub.s32 %v1560, %v1562
        %v1564 = vrot.slane %v1556, %v1563
        %v1566 = vunpack.c.l.s4 1983009808
        %v1567 = vunpack.c.0.s8 %v1566
        %v1568 = vlaneseq
        %v1569 = vshrl.u32 %v1568, 7
        %v1570 = vsub.s32 %v1567, %v1569
        %v1571 = vrot.slane %v1557, %v1570
        %v1572 = vcombine.low %v1471, %v1479
        %v1573 = vcombine.high %v1471, %v1479
        %v1575 = vunpack.c.l.s4 1983009808
        %v1576 = vunpack.c.0.s8 %v1575
        %v1577 = vlaneseq
        %v1578 = vshrl.u32 %v1577, 7
        %v1579 = vsub.s32 %v1576, %v1578
        %v1580 = vrot.slane %v1572, %v1579
        %v1582 = vunpack.c.l.s4 1983009808
        %v1583 = vunpack.c.0.s8 %v1582
        %v1584 = vlaneseq
        %v1585 = vshrl.u32 %v1584, 7
        %v1586 = vsub.s32 %v1583, %v1585
        %v1587 = vrot.slane %v1573, %v1586
        %v1588 = vcombine.low %v1564, %v1580
        %v1589 = vcombine.high %v1564, %v1580
        %v1591 = vunpack.c.l.s4 1934713408
        %v1592 = vunpack.c.0.s8 %v1591
        %v1593 = vlaneseq
        %v1594 = vshrl.u32 %v1593, 7
        %v1595 = vsub.s32 %v1592, %v1594
        %v1596 = vrot.slane %v1588, %v1595
        %v1598 = vunpack.c.l.s4 1934713408
        %v1599 = vunpack.c.0.s8 %v1598
        %v1600 = vlaneseq
        %v1601 = vshrl.u32 %v1600, 7
        %v1602 = vsub.s32 %v1599, %v1601
        %v1603 = vrot.slane %v1589, %v1602
        %v1604 = vcombine.low %v1571, %v1587
        %v1605 = vcombine.high %v1571, %v1587
        %v1607 = vunpack.c.l.s4 1934713408
        %v1608 = vunpack.c.0.s8 %v1607
        %v1609 = vlaneseq
        %v1610 = vshrl.u32 %v1609, 7
        %v1611 = vsub.s32 %v1608, %v1610
        %v1612 = vrot.slane %v1604, %v1611
        %v1614 = vunpack.c.l.s4 1934713408
        %v1615 = vunpack.c.0.s8 %v1614
        %v1616 = vlaneseq
        %v1617 = vshrl.u32 %v1616, 7
        %v1618 = vsub.s32 %v1615, %v1617
        %v1619 = vrot.slane %v1605, %v1618
        %v1620 = vcombine.high %v1596, 0.0
        %v1621 = vcombine.high %v1603, 0.0
        %v1622 = vcombine.high %v1612, 0.0
        %v1623 = vcombine.high %v1619, 0.0
        %1625 = vrot.lane.b32.xlu0 %v1552, 16
        %v1626 = vpop.permute.xlu0 %1625
        %1629 = vrot.lane.b32.xlu0 %v1535, 32
        %v1630 = vpop.permute.xlu0 %1629
        %1633 = vrot.lane.b32.xlu0 %v1553, 48
        %v1634 = vpop.permute.xlu0 %1633
        %1637 = vrot.lane.b32.xlu0 %v1544, 64
        %v1638 = vpop.permute.xlu0 %1637
        %1641 = vrot.lane.b32.xlu0 %v1554, 80
        %v1642 = vpop.permute.xlu0 %1641
        %1645 = vrot.lane.b32.xlu0 %v1551, 96
        %v1646 = vpop.permute.xlu0 %1645
        %1649 = vrot.lane.b32.xlu0 %v1555, 112
        %v1650 = vpop.permute.xlu0 %1649
        %1653 = vrot.lane.b32.xlu0 %v1620, 16
        %v1654 = vpop.permute.xlu0 %1653
        %1657 = vrot.lane.b32.xlu0 %v1603, 32
        %v1658 = vpop.permute.xlu0 %1657
        %1661 = vrot.lane.b32.xlu0 %v1621, 48
        %v1662 = vpop.permute.xlu0 %1661
        %1665 = vrot.lane.b32.xlu0 %v1612, 64
        %v1666 = vpop.permute.xlu0 %1665
        %1669 = vrot.lane.b32.xlu0 %v1622, 80
        %v1670 = vpop.permute.xlu0 %1669
        %1673 = vrot.lane.b32.xlu0 %v1619, 96
        %v1674 = vpop.permute.xlu0 %1673
        %1677 = vrot.lane.b32.xlu0 %v1623, 112
        %v1678 = vpop.permute.xlu0 %1677
        %v1680 = vsel %vm453, %v1528, %v1626
        %v1681 = vsel %vm455, %v1680, %v1630
        %v1682 = vsel %vm457, %v1681, %v1634
        %v1683 = vsel %vm459, %v1682, %v1638
        %v1684 = vsel %vm461, %v1683, %v1642
        %v1685 = vsel %vm463, %v1684, %v1646
        %v1686 = vsel %vm465, %v1685, %v1650
        %v1687 = vsel %vm453, %v1596, %v1654
        %v1688 = vsel %vm455, %v1687, %v1658
        %v1689 = vsel %vm457, %v1688, %v1662
        %v1690 = vsel %vm459, %v1689, %v1666
        %v1691 = vsel %vm461, %v1690, %v1670
        %v1692 = vsel %vm463, %v1691, %v1674
        %v1693 = vsel %vm465, %v1692, %v1678
        %v1696 = vrot.slane %v1686, 4
        %v1697 = vrot.slane %v1693, 4
        %1700 = vst [vmem:[#allocation3 + $0x20] sm:$0xf0] %v1696
        %1701 = vst [vmem:[#allocation3 + $0x28] sm:$0xf0] %v1697
        %v1702 = vld [vmem:[#allocation2 + $0x2] sm:$0xff]
        %v1703 = vld [vmem:[#allocation2 + $0xa] sm:$0xff]
        %v1704 = vld [vmem:[#allocation2 + $0x1a] sm:$0xff]
        %v1705 = vld [vmem:[#allocation2 + $0x22] sm:$0xff]
        %v1706 = vld [vmem:[#allocation2 + $0x32] sm:$0xff]
        %v1707 = vld [vmem:[#allocation2 + $0x3a] sm:$0xff]
        %v1708 = vld [vmem:[#allocation2 + $0x4a] sm:$0xff]
        %v1709 = vld [vmem:[#allocation2 + $0x52] sm:$0xff]
        %v1710 = vcombine.low %v1702, %v1706
        %v1711 = vcombine.high %v1702, %v1706
        %v1713 = vunpack.c.l.s4 1983009808
        %v1714 = vunpack.c.0.s8 %v1713
        %v1715 = vlaneseq
        %v1716 = vshrl.u32 %v1715, 7
        %v1717 = vsub.s32 %v1714, %v1716
        %v1718 = vrot.slane %v1710, %v1717
        %v1720 = vunpack.c.l.s4 1983009808
        %v1721 = vunpack.c.0.s8 %v1720
        %v1722 = vlaneseq
        %v1723 = vshrl.u32 %v1722, 7
        %v1724 = vsub.s32 %v1721, %v1723
        %v1725 = vrot.slane %v1711, %v1724
        %v1726 = vcombine.low %v1704, %v1708
        %v1727 = vcombine.high %v1704, %v1708
        %v1729 = vunpack.c.l.s4 1983009808
        %v1730 = vunpack.c.0.s8 %v1729
        %v1731 = vlaneseq
        %v1732 = vshrl.u32 %v1731, 7
        %v1733 = vsub.s32 %v1730, %v1732
        %v1734 = vrot.slane %v1726, %v1733
        %v1736 = vunpack.c.l.s4 1983009808
        %v1737 = vunpack.c.0.s8 %v1736
        %v1738 = vlaneseq
        %v1739 = vshrl.u32 %v1738, 7
        %v1740 = vsub.s32 %v1737, %v1739
        %v1741 = vrot.slane %v1727, %v1740
        %v1742 = vcombine.low %v1718, %v1734
        %v1743 = vcombine.high %v1718, %v1734
        %v1745 = vunpack.c.l.s4 1934713408
        %v1746 = vunpack.c.0.s8 %v1745
        %v1747 = vlaneseq
        %v1748 = vshrl.u32 %v1747, 7
        %v1749 = vsub.s32 %v1746, %v1748
        %v1750 = vrot.slane %v1742, %v1749
        %v1752 = vunpack.c.l.s4 1934713408
        %v1753 = vunpack.c.0.s8 %v1752
        %v1754 = vlaneseq
        %v1755 = vshrl.u32 %v1754, 7
        %v1756 = vsub.s32 %v1753, %v1755
        %v1757 = vrot.slane %v1743, %v1756
        %v1758 = vcombine.low %v1725, %v1741
        %v1759 = vcombine.high %v1725, %v1741
        %v1761 = vunpack.c.l.s4 1934713408
        %v1762 = vunpack.c.0.s8 %v1761
        %v1763 = vlaneseq
        %v1764 = vshrl.u32 %v1763, 7
        %v1765 = vsub.s32 %v1762, %v1764
        %v1766 = vrot.slane %v1758, %v1765
        %v1768 = vunpack.c.l.s4 1934713408
        %v1769 = vunpack.c.0.s8 %v1768
        %v1770 = vlaneseq
        %v1771 = vshrl.u32 %v1770, 7
        %v1772 = vsub.s32 %v1769, %v1771
        %v1773 = vrot.slane %v1759, %v1772
        %v1774 = vcombine.high %v1750, 0.0
        %v1775 = vcombine.high %v1757, 0.0
        %v1776 = vcombine.high %v1766, 0.0
        %v1777 = vcombine.high %v1773, 0.0
        %v1778 = vcombine.low %v1703, %v1707
        %v1779 = vcombine.high %v1703, %v1707
        %v1781 = vunpack.c.l.s4 1983009808
        %v1782 = vunpack.c.0.s8 %v1781
        %v1783 = vlaneseq
        %v1784 = vshrl.u32 %v1783, 7
        %v1785 = vsub.s32 %v1782, %v1784
        %v1786 = vrot.slane %v1778, %v1785
        %v1788 = vunpack.c.l.s4 1983009808
        %v1789 = vunpack.c.0.s8 %v1788
        %v1790 = vlaneseq
        %v1791 = vshrl.u32 %v1790, 7
        %v1792 = vsub.s32 %v1789, %v1791
        %v1793 = vrot.slane %v1779, %v1792
        %v1794 = vcombine.low %v1705, %v1709
        %v1795 = vcombine.high %v1705, %v1709
        %v1797 = vunpack.c.l.s4 1983009808
        %v1798 = vunpack.c.0.s8 %v1797
        %v1799 = vlaneseq
        %v1800 = vshrl.u32 %v1799, 7
        %v1801 = vsub.s32 %v1798, %v1800
        %v1802 = vrot.slane %v1794, %v1801
        %v1804 = vunpack.c.l.s4 1983009808
        %v1805 = vunpack.c.0.s8 %v1804
        %v1806 = vlaneseq
        %v1807 = vshrl.u32 %v1806, 7
        %v1808 = vsub.s32 %v1805, %v1807
        %v1809 = vrot.slane %v1795, %v1808
        %v1810 = vcombine.low %v1786, %v1802
        %v1811 = vcombine.high %v1786, %v1802
        %v1813 = vunpack.c.l.s4 1934713408
        %v1814 = vunpack.c.0.s8 %v1813
        %v1815 = vlaneseq
        %v1816 = vshrl.u32 %v1815, 7
        %v1817 = vsub.s32 %v1814, %v1816
        %v1818 = vrot.slane %v1810, %v1817
        %v1820 = vunpack.c.l.s4 1934713408
        %v1821 = vunpack.c.0.s8 %v1820
        %v1822 = vlaneseq
        %v1823 = vshrl.u32 %v1822, 7
        %v1824 = vsub.s32 %v1821, %v1823
        %v1825 = vrot.slane %v1811, %v1824
        %v1826 = vcombine.low %v1793, %v1809
        %v1827 = vcombine.high %v1793, %v1809
        %v1829 = vunpack.c.l.s4 1934713408
        %v1830 = vunpack.c.0.s8 %v1829
        %v1831 = vlaneseq
        %v1832 = vshrl.u32 %v1831, 7
        %v1833 = vsub.s32 %v1830, %v1832
        %v1834 = vrot.slane %v1826, %v1833
        %v1836 = vunpack.c.l.s4 1934713408
        %v1837 = vunpack.c.0.s8 %v1836
        %v1838 = vlaneseq
        %v1839 = vshrl.u32 %v1838, 7
        %v1840 = vsub.s32 %v1837, %v1839
        %v1841 = vrot.slane %v1827, %v1840
        %v1842 = vcombine.high %v1818, 0.0
        %v1843 = vcombine.high %v1825, 0.0
        %v1844 = vcombine.high %v1834, 0.0
        %v1845 = vcombine.high %v1841, 0.0
        %1847 = vrot.lane.b32.xlu0 %v1774, 16
        %v1848 = vpop.permute.xlu0 %1847
        %1851 = vrot.lane.b32.xlu0 %v1757, 32
        %v1852 = vpop.permute.xlu0 %1851
        %1855 = vrot.lane.b32.xlu0 %v1775, 48
        %v1856 = vpop.permute.xlu0 %1855
        %1859 = vrot.lane.b32.xlu0 %v1766, 64
        %v1860 = vpop.permute.xlu0 %1859
        %1863 = vrot.lane.b32.xlu0 %v1776, 80
        %v1864 = vpop.permute.xlu0 %1863
        %1867 = vrot.lane.b32.xlu0 %v1773, 96
        %v1868 = vpop.permute.xlu0 %1867
        %1871 = vrot.lane.b32.xlu0 %v1777, 112
        %v1872 = vpop.permute.xlu0 %1871
        %1875 = vrot.lane.b32.xlu0 %v1842, 16
        %v1876 = vpop.permute.xlu0 %1875
        %1879 = vrot.lane.b32.xlu0 %v1825, 32
        %v1880 = vpop.permute.xlu0 %1879
        %1883 = vrot.lane.b32.xlu0 %v1843, 48
        %v1884 = vpop.permute.xlu0 %1883
        %1887 = vrot.lane.b32.xlu0 %v1834, 64
        %v1888 = vpop.permute.xlu0 %1887
        %1891 = vrot.lane.b32.xlu0 %v1844, 80
        %v1892 = vpop.permute.xlu0 %1891
        %1895 = vrot.lane.b32.xlu0 %v1841, 96
        %v1896 = vpop.permute.xlu0 %1895
        %1899 = vrot.lane.b32.xlu0 %v1845, 112
        %v1900 = vpop.permute.xlu0 %1899
        %v1902 = vsel %vm453, %v1750, %v1848
        %v1903 = vsel %vm455, %v1902, %v1852
        %v1904 = vsel %vm457, %v1903, %v1856
        %v1905 = vsel %vm459, %v1904, %v1860
        %v1906 = vsel %vm461, %v1905, %v1864
        %v1907 = vsel %vm463, %v1906, %v1868
        %v1908 = vsel %vm465, %v1907, %v1872
        %v1909 = vsel %vm453, %v1818, %v1876
        %v1910 = vsel %vm455, %v1909, %v1880
        %v1911 = vsel %vm457, %v1910, %v1884
        %v1912 = vsel %vm459, %v1911, %v1888
        %v1913 = vsel %vm461, %v1912, %v1892
        %v1914 = vsel %vm463, %v1913, %v1896
        %v1915 = vsel %vm465, %v1914, %v1900
        %1916 = vst [vmem:[#allocation3 + $0x30] sm:$0xf] %v1908
        %1917 = vst [vmem:[#allocation3 + $0x38] sm:$0xf] %v1915
        %v1918 = vld [vmem:[#allocation2 + $0x2] sm:$0xff]
        %v1919 = vld [vmem:[#allocation2 + $0xa] sm:$0xff]
        %v1920 = vld [vmem:[#allocation2 + $0x1a] sm:$0xff]
        %v1921 = vld [vmem:[#allocation2 + $0x22] sm:$0xff]
        %v1922 = vld [vmem:[#allocation2 + $0x32] sm:$0xff]
        %v1923 = vld [vmem:[#allocation2 + $0x3a] sm:$0xff]
        %v1924 = vld [vmem:[#allocation2 + $0x4a] sm:$0xff]
        %v1925 = vld [vmem:[#allocation2 + $0x52] sm:$0xff]
        %1934 = vrot.lane.b32.xlu0 %v1918, 127
        %v1935 = vpop.permute.xlu0 %1934
        %1936 = vrot.lane.b32.xlu0 %v1919, 127
        %v1937 = vpop.permute.xlu0 %1936
        %1938 = vrot.lane.b32.xlu0 %v1920, 127
        %v1939 = vpop.permute.xlu0 %1938
        %1940 = vrot.lane.b32.xlu0 %v1921, 127
        %v1941 = vpop.permute.xlu0 %1940
        %1942 = vrot.lane.b32.xlu0 %v1922, 127
        %v1943 = vpop.permute.xlu0 %1942
        %1944 = vrot.lane.b32.xlu0 %v1923, 127
        %v1945 = vpop.permute.xlu0 %1944
        %1946 = vrot.lane.b32.xlu0 %v1924, 127
        %v1947 = vpop.permute.xlu0 %1946
        %1948 = vrot.lane.b32.xlu0 %v1925, 127
        %v1949 = vpop.permute.xlu0 %1948
        %v1958 = vcombine.low %v1935, %v1943
        %v1959 = vcombine.high %v1935, %v1943
        %v1961 = vunpack.c.l.s4 1983009808
        %v1962 = vunpack.c.0.s8 %v1961
        %v1963 = vlaneseq
        %v1964 = vshrl.u32 %v1963, 7
        %v1965 = vsub.s32 %v1962, %v1964
        %v1966 = vrot.slane %v1958, %v1965
        %v1968 = vunpack.c.l.s4 1983009808
        %v1969 = vunpack.c.0.s8 %v1968
        %v1970 = vlaneseq
        %v1971 = vshrl.u32 %v1970, 7
        %v1972 = vsub.s32 %v1969, %v1971
        %v1973 = vrot.slane %v1959, %v1972
        %v1974 = vcombine.low %v1939, %v1947
        %v1975 = vcombine.high %v1939, %v1947
        %v1977 = vunpack.c.l.s4 1983009808
        %v1978 = vunpack.c.0.s8 %v1977
        %v1979 = vlaneseq
        %v1980 = vshrl.u32 %v1979, 7
        %v1981 = vsub.s32 %v1978, %v1980
        %v1982 = vrot.slane %v1974, %v1981
        %v1984 = vunpack.c.l.s4 1983009808
        %v1985 = vunpack.c.0.s8 %v1984
        %v1986 = vlaneseq
        %v1987 = vshrl.u32 %v1986, 7
        %v1988 = vsub.s32 %v1985, %v1987
        %v1989 = vrot.slane %v1975, %v1988
        %v1990 = vcombine.low %v1966, %v1982
        %v1991 = vcombine.high %v1966, %v1982
        %v1993 = vunpack.c.l.s4 1934713408
        %v1994 = vunpack.c.0.s8 %v1993
        %v1995 = vlaneseq
        %v1996 = vshrl.u32 %v1995, 7
        %v1997 = vsub.s32 %v1994, %v1996
        %v1998 = vrot.slane %v1990, %v1997
        %v2000 = vunpack.c.l.s4 1934713408
        %v2001 = vunpack.c.0.s8 %v2000
        %v2002 = vlaneseq
        %v2003 = vshrl.u32 %v2002, 7
        %v2004 = vsub.s32 %v2001, %v2003
        %v2005 = vrot.slane %v1991, %v2004
        %v2006 = vcombine.low %v1973, %v1989
        %v2007 = vcombine.high %v1973, %v1989
        %v2009 = vunpack.c.l.s4 1934713408
        %v2010 = vunpack.c.0.s8 %v2009
        %v2011 = vlaneseq
        %v2012 = vshrl.u32 %v2011, 7
        %v2013 = vsub.s32 %v2010, %v2012
        %v2014 = vrot.slane %v2006, %v2013
        %v2016 = vunpack.c.l.s4 1934713408
        %v2017 = vunpack.c.0.s8 %v2016
        %v2018 = vlaneseq
        %v2019 = vshrl.u32 %v2018, 7
        %v2020 = vsub.s32 %v2017, %v2019
        %v2021 = vrot.slane %v2007, %v2020
        %v2022 = vcombine.high %v1998, 0.0
        %v2023 = vcombine.high %v2005, 0.0
        %v2024 = vcombine.high %v2014, 0.0
        %v2025 = vcombine.high %v2021, 0.0
        %v2026 = vcombine.low %v1937, %v1945
        %v2027 = vcombine.high %v1937, %v1945
        %v2029 = vunpack.c.l.s4 1983009808
        %v2030 = vunpack.c.0.s8 %v2029
        %v2031 = vlaneseq
        %v2032 = vshrl.u32 %v2031, 7
        %v2033 = vsub.s32 %v2030, %v2032
        %v2034 = vrot.slane %v2026, %v2033
        %v2036 = vunpack.c.l.s4 1983009808
        %v2037 = vunpack.c.0.s8 %v2036
        %v2038 = vlaneseq
        %v2039 = vshrl.u32 %v2038, 7
        %v2040 = vsub.s32 %v2037, %v2039
        %v2041 = vrot.slane %v2027, %v2040
        %v2042 = vcombine.low %v1941, %v1949
        %v2043 = vcombine.high %v1941, %v1949
        %v2045 = vunpack.c.l.s4 1983009808
        %v2046 = vunpack.c.0.s8 %v2045
        %v2047 = vlaneseq
        %v2048 = vshrl.u32 %v2047, 7
        %v2049 = vsub.s32 %v2046, %v2048
        %v2050 = vrot.slane %v2042, %v2049
        %v2052 = vunpack.c.l.s4 1983009808
        %v2053 = vunpack.c.0.s8 %v2052
        %v2054 = vlaneseq
        %v2055 = vshrl.u32 %v2054, 7
        %v2056 = vsub.s32 %v2053, %v2055
        %v2057 = vrot.slane %v2043, %v2056
        %v2058 = vcombine.low %v2034, %v2050
        %v2059 = vcombine.high %v2034, %v2050
        %v2061 = vunpack.c.l.s4 1934713408
        %v2062 = vunpack.c.0.s8 %v2061
        %v2063 = vlaneseq
        %v2064 = vshrl.u32 %v2063, 7
        %v2065 = vsub.s32 %v2062, %v2064
        %v2066 = vrot.slane %v2058, %v2065
        %v2068 = vunpack.c.l.s4 1934713408
        %v2069 = vunpack.c.0.s8 %v2068
        %v2070 = vlaneseq
        %v2071 = vshrl.u32 %v2070, 7
        %v2072 = vsub.s32 %v2069, %v2071
        %v2073 = vrot.slane %v2059, %v2072
        %v2074 = vcombine.low %v2041, %v2057
        %v2075 = vcombine.high %v2041, %v2057
        %v2077 = vunpack.c.l.s4 1934713408
        %v2078 = vunpack.c.0.s8 %v2077
        %v2079 = vlaneseq
        %v2080 = vshrl.u32 %v2079, 7
        %v2081 = vsub.s32 %v2078, %v2080
        %v2082 = vrot.slane %v2074, %v2081
        %v2084 = vunpack.c.l.s4 1934713408
        %v2085 = vunpack.c.0.s8 %v2084
        %v2086 = vlaneseq
        %v2087 = vshrl.u32 %v2086, 7
        %v2088 = vsub.s32 %v2085, %v2087
        %v2089 = vrot.slane %v2075, %v2088
        %v2090 = vcombine.high %v2066, 0.0
        %v2091 = vcombine.high %v2073, 0.0
        %v2092 = vcombine.high %v2082, 0.0
        %v2093 = vcombine.high %v2089, 0.0
        %2095 = vrot.lane.b32.xlu0 %v2022, 16
        %v2096 = vpop.permute.xlu0 %2095
        %2099 = vrot.lane.b32.xlu0 %v2005, 32
        %v2100 = vpop.permute.xlu0 %2099
        %2103 = vrot.lane.b32.xlu0 %v2023, 48
        %v2104 = vpop.permute.xlu0 %2103
        %2107 = vrot.lane.b32.xlu0 %v2014, 64
        %v2108 = vpop.permute.xlu0 %2107
        %2111 = vrot.lane.b32.xlu0 %v2024, 80
        %v2112 = vpop.permute.xlu0 %2111
        %2115 = vrot.lane.b32.xlu0 %v2021, 96
        %v2116 = vpop.permute.xlu0 %2115
        %2119 = vrot.lane.b32.xlu0 %v2025, 112
        %v2120 = vpop.permute.xlu0 %2119
        %2123 = vrot.lane.b32.xlu0 %v2090, 16
        %v2124 = vpop.permute.xlu0 %2123
        %2127 = vrot.lane.b32.xlu0 %v2073, 32
        %v2128 = vpop.permute.xlu0 %2127
        %2131 = vrot.lane.b32.xlu0 %v2091, 48
        %v2132 = vpop.permute.xlu0 %2131
        %2135 = vrot.lane.b32.xlu0 %v2082, 64
        %v2136 = vpop.permute.xlu0 %2135
        %2139 = vrot.lane.b32.xlu0 %v2092, 80
        %v2140 = vpop.permute.xlu0 %2139
        %2143 = vrot.lane.b32.xlu0 %v2089, 96
        %v2144 = vpop.permute.xlu0 %2143
        %2147 = vrot.lane.b32.xlu0 %v2093, 112
        %v2148 = vpop.permute.xlu0 %2147
        %v2150 = vsel %vm453, %v1998, %v2096
        %v2151 = vsel %vm455, %v2150, %v2100
        %v2152 = vsel %vm457, %v2151, %v2104
        %v2153 = vsel %vm459, %v2152, %v2108
        %v2154 = vsel %vm461, %v2153, %v2112
        %v2155 = vsel %vm463, %v2154, %v2116
        %v2156 = vsel %vm465, %v2155, %v2120
        %v2157 = vsel %vm453, %v2066, %v2124
        %v2158 = vsel %vm455, %v2157, %v2128
        %v2159 = vsel %vm457, %v2158, %v2132
        %v2160 = vsel %vm459, %v2159, %v2136
        %v2161 = vsel %vm461, %v2160, %v2140
        %v2162 = vsel %vm463, %v2161, %v2144
        %v2163 = vsel %vm465, %v2162, %v2148
        %v2166 = vrot.slane %v2156, 4
        %v2167 = vrot.slane %v2163, 4
        %2170 = vst [vmem:[#allocation3 + $0x30] sm:$0xf0] %v2166
        %2171 = vst [vmem:[#allocation3 + $0x38] sm:$0xf0] %v2167
        %v2172 = vld [vmem:[#allocation2 + $0x2] sm:$0xff]
        %v2173 = vld [vmem:[#allocation2 + $0xa] sm:$0xff]
        %v2174 = vld [vmem:[#allocation2 + $0x1a] sm:$0xff]
        %v2175 = vld [vmem:[#allocation2 + $0x22] sm:$0xff]
        %v2176 = vld [vmem:[#allocation2 + $0x32] sm:$0xff]
        %v2177 = vld [vmem:[#allocation2 + $0x3a] sm:$0xff]
        %v2178 = vld [vmem:[#allocation2 + $0x4a] sm:$0xff]
        %v2179 = vld [vmem:[#allocation2 + $0x52] sm:$0xff]
        %2188 = vrot.lane.b32.xlu0 %v2172, 126
        %v2189 = vpop.permute.xlu0 %2188
        %2190 = vrot.lane.b32.xlu0 %v2173, 126
        %v2191 = vpop.permute.xlu0 %2190
        %2192 = vrot.lane.b32.xlu0 %v2174, 126
        %v2193 = vpop.permute.xlu0 %2192
        %2194 = vrot.lane.b32.xlu0 %v2175, 126
        %v2195 = vpop.permute.xlu0 %2194
        %2196 = vrot.lane.b32.xlu0 %v2176, 126
        %v2197 = vpop.permute.xlu0 %2196
        %2198 = vrot.lane.b32.xlu0 %v2177, 126
        %v2199 = vpop.permute.xlu0 %2198
        %2200 = vrot.lane.b32.xlu0 %v2178, 126
        %v2201 = vpop.permute.xlu0 %2200
        %2202 = vrot.lane.b32.xlu0 %v2179, 126
        %v2203 = vpop.permute.xlu0 %2202
        %v2212 = vcombine.low %v2189, %v2197
        %v2213 = vcombine.high %v2189, %v2197
        %v2215 = vunpack.c.l.s4 1983009808
        %v2216 = vunpack.c.0.s8 %v2215
        %v2217 = vlaneseq
        %v2218 = vshrl.u32 %v2217, 7
        %v2219 = vsub.s32 %v2216, %v2218
        %v2220 = vrot.slane %v2212, %v2219
        %v2222 = vunpack.c.l.s4 1983009808
        %v2223 = vunpack.c.0.s8 %v2222
        %v2224 = vlaneseq
        %v2225 = vshrl.u32 %v2224, 7
        %v2226 = vsub.s32 %v2223, %v2225
        %v2227 = vrot.slane %v2213, %v2226
        %v2228 = vcombine.low %v2193, %v2201
        %v2229 = vcombine.high %v2193, %v2201
        %v2231 = vunpack.c.l.s4 1983009808
        %v2232 = vunpack.c.0.s8 %v2231
        %v2233 = vlaneseq
        %v2234 = vshrl.u32 %v2233, 7
        %v2235 = vsub.s32 %v2232, %v2234
        %v2236 = vrot.slane %v2228, %v2235
        %v2238 = vunpack.c.l.s4 1983009808
        %v2239 = vunpack.c.0.s8 %v2238
        %v2240 = vlaneseq
        %v2241 = vshrl.u32 %v2240, 7
        %v2242 = vsub.s32 %v2239, %v2241
        %v2243 = vrot.slane %v2229, %v2242
        %v2244 = vcombine.low %v2220, %v2236
        %v2245 = vcombine.high %v2220, %v2236
        %v2247 = vunpack.c.l.s4 1934713408
        %v2248 = vunpack.c.0.s8 %v2247
        %v2249 = vlaneseq
        %v2250 = vshrl.u32 %v2249, 7
        %v2251 = vsub.s32 %v2248, %v2250
        %v2252 = vrot.slane %v2244, %v2251
        %v2254 = vunpack.c.l.s4 1934713408
        %v2255 = vunpack.c.0.s8 %v2254
        %v2256 = vlaneseq
        %v2257 = vshrl.u32 %v2256, 7
        %v2258 = vsub.s32 %v2255, %v2257
        %v2259 = vrot.slane %v2245, %v2258
        %v2260 = vcombine.low %v2227, %v2243
        %v2261 = vcombine.high %v2227, %v2243
        %v2263 = vunpack.c.l.s4 1934713408
        %v2264 = vunpack.c.0.s8 %v2263
        %v2265 = vlaneseq
        %v2266 = vshrl.u32 %v2265, 7
        %v2267 = vsub.s32 %v2264, %v2266
        %v2268 = vrot.slane %v2260, %v2267
        %v2270 = vunpack.c.l.s4 1934713408
        %v2271 = vunpack.c.0.s8 %v2270
        %v2272 = vlaneseq
        %v2273 = vshrl.u32 %v2272, 7
        %v2274 = vsub.s32 %v2271, %v2273
        %v2275 = vrot.slane %v2261, %v2274
        %v2276 = vcombine.high %v2252, 0.0
        %v2277 = vcombine.high %v2259, 0.0
        %v2278 = vcombine.high %v2268, 0.0
        %v2279 = vcombine.high %v2275, 0.0
        %v2280 = vcombine.low %v2191, %v2199
        %v2281 = vcombine.high %v2191, %v2199
        %v2283 = vunpack.c.l.s4 1983009808
        %v2284 = vunpack.c.0.s8 %v2283
        %v2285 = vlaneseq
        %v2286 = vshrl.u32 %v2285, 7
        %v2287 = vsub.s32 %v2284, %v2286
        %v2288 = vrot.slane %v2280, %v2287
        %v2290 = vunpack.c.l.s4 1983009808
        %v2291 = vunpack.c.0.s8 %v2290
        %v2292 = vlaneseq
        %v2293 = vshrl.u32 %v2292, 7
        %v2294 = vsub.s32 %v2291, %v2293
        %v2295 = vrot.slane %v2281, %v2294
        %v2296 = vcombine.low %v2195, %v2203
        %v2297 = vcombine.high %v2195, %v2203
        %v2299 = vunpack.c.l.s4 1983009808
        %v2300 = vunpack.c.0.s8 %v2299
        %v2301 = vlaneseq
        %v2302 = vshrl.u32 %v2301, 7
        %v2303 = vsub.s32 %v2300, %v2302
        %v2304 = vrot.slane %v2296, %v2303
        %v2306 = vunpack.c.l.s4 1983009808
        %v2307 = vunpack.c.0.s8 %v2306
        %v2308 = vlaneseq
        %v2309 = vshrl.u32 %v2308, 7
        %v2310 = vsub.s32 %v2307, %v2309
        %v2311 = vrot.slane %v2297, %v2310
        %v2312 = vcombine.low %v2288, %v2304
        %v2313 = vcombine.high %v2288, %v2304
        %v2315 = vunpack.c.l.s4 1934713408
        %v2316 = vunpack.c.0.s8 %v2315
        %v2317 = vlaneseq
        %v2318 = vshrl.u32 %v2317, 7
        %v2319 = vsub.s32 %v2316, %v2318
        %v2320 = vrot.slane %v2312, %v2319
        %v2322 = vunpack.c.l.s4 1934713408
        %v2323 = vunpack.c.0.s8 %v2322
        %v2324 = vlaneseq
        %v2325 = vshrl.u32 %v2324, 7
        %v2326 = vsub.s32 %v2323, %v2325
        %v2327 = vrot.slane %v2313, %v2326
        %v2328 = vcombine.low %v2295, %v2311
        %v2329 = vcombine.high %v2295, %v2311
        %v2331 = vunpack.c.l.s4 1934713408
        %v2332 = vunpack.c.0.s8 %v2331
        %v2333 = vlaneseq
        %v2334 = vshrl.u32 %v2333, 7
        %v2335 = vsub.s32 %v2332, %v2334
        %v2336 = vrot.slane %v2328, %v2335
        %v2338 = vunpack.c.l.s4 1934713408
        %v2339 = vunpack.c.0.s8 %v2338
        %v2340 = vlaneseq
        %v2341 = vshrl.u32 %v2340, 7
        %v2342 = vsub.s32 %v2339, %v2341
        %v2343 = vrot.slane %v2329, %v2342
        %v2344 = vcombine.high %v2320, 0.0
        %v2345 = vcombine.high %v2327, 0.0
        %v2346 = vcombine.high %v2336, 0.0
        %v2347 = vcombine.high %v2343, 0.0
        %2349 = vrot.lane.b32.xlu0 %v2276, 16
        %v2350 = vpop.permute.xlu0 %2349
        %2353 = vrot.lane.b32.xlu0 %v2259, 32
        %v2354 = vpop.permute.xlu0 %2353
        %2357 = vrot.lane.b32.xlu0 %v2277, 48
        %v2358 = vpop.permute.xlu0 %2357
        %2361 = vrot.lane.b32.xlu0 %v2268, 64
        %v2362 = vpop.permute.xlu0 %2361
        %2365 = vrot.lane.b32.xlu0 %v2278, 80
        %v2366 = vpop.permute.xlu0 %2365
        %2369 = vrot.lane.b32.xlu0 %v2275, 96
        %v2370 = vpop.permute.xlu0 %2369
        %2373 = vrot.lane.b32.xlu0 %v2279, 112
        %v2374 = vpop.permute.xlu0 %2373
        %2377 = vrot.lane.b32.xlu0 %v2344, 16
        %v2378 = vpop.permute.xlu0 %2377
        %2381 = vrot.lane.b32.xlu0 %v2327, 32
        %v2382 = vpop.permute.xlu0 %2381
        %2385 = vrot.lane.b32.xlu0 %v2345, 48
        %v2386 = vpop.permute.xlu0 %2385
        %2389 = vrot.lane.b32.xlu0 %v2336, 64
        %v2390 = vpop.permute.xlu0 %2389
        %2393 = vrot.lane.b32.xlu0 %v2346, 80
        %v2394 = vpop.permute.xlu0 %2393
        %2397 = vrot.lane.b32.xlu0 %v2343, 96
        %v2398 = vpop.permute.xlu0 %2397
        %2401 = vrot.lane.b32.xlu0 %v2347, 112
        %v2402 = vpop.permute.xlu0 %2401
        %v2404 = vsel %vm453, %v2252, %v2350
        %v2405 = vsel %vm455, %v2404, %v2354
        %v2406 = vsel %vm457, %v2405, %v2358
        %v2407 = vsel %vm459, %v2406, %v2362
        %v2408 = vsel %vm461, %v2407, %v2366
        %v2409 = vsel %vm463, %v2408, %v2370
        %v2410 = vsel %vm465, %v2409, %v2374
        %v2411 = vsel %vm453, %v2320, %v2378
        %v2412 = vsel %vm455, %v2411, %v2382
        %v2413 = vsel %vm457, %v2412, %v2386
        %v2414 = vsel %vm459, %v2413, %v2390
        %v2415 = vsel %vm461, %v2414, %v2394
        %v2416 = vsel %vm463, %v2415, %v2398
        %v2417 = vsel %vm465, %v2416, %v2402
        %2418 = vst [vmem:[#allocation3 + $0x40] sm:$0xf] %v2410
        %2419 = vst [vmem:[#allocation3 + $0x48] sm:$0xf] %v2417
        %v2420 = vld [vmem:[%s1] sm:$0xff]
        %v2421 = vld [vmem:[%s1 + $0x8] sm:$0xff]
        %v2422 = vld [vmem:[%s1 + $0x10] sm:$0xff]
        %v2423 = vld [vmem:[%s1 + $0x18] sm:$0xff]
        %v2424 = vpack.c.bf16 %v2421, %v2420
        %v2425 = vpack.c.bf16 %v2423, %v2422
        %v2426 = vld [vmem:[#allocation3] sm:$0xff]
        %v2427 = vld [vmem:[#allocation3 + $0x8] sm:$0xff]
        %v2428 = vld [vmem:[#allocation3 + $0x10] sm:$0xff]
        %v2429 = vld [vmem:[#allocation3 + $0x18] sm:$0xff]
        %v2430 = vld [vmem:[#allocation3 + $0x20] sm:$0xff]
        %v2431 = vld [vmem:[#allocation3 + $0x28] sm:$0xff]
        %v2432 = vld [vmem:[#allocation3 + $0x30] sm:$0xff]
        %v2433 = vld [vmem:[#allocation3 + $0x38] sm:$0xff]
        %v2434 = vld [vmem:[#allocation3 + $0x40] sm:$0xf]
        %v2435 = vld [vmem:[#allocation3 + $0x48] sm:$0xf]
        %v2436 = vpack.c.bf16 %v2428, %v2426
        %v2437 = vpack.c.bf16 %v2429, %v2427
        %v2438 = vpack.c.bf16 %v2432, %v2430
        %v2439 = vpack.c.bf16 %v2433, %v2431
        %v2440 = vpack.c.bf16 %v2434, %v2434
        %v2441 = vpack.c.bf16 %v2435, %v2435
        %v2442 = vld [vmem:[%s2] sm:$0xff]
        %v2443 = vld [vmem:[%s2 + $0x8] sm:$0xff]
        %v2444 = vld [vmem:[%s2 + $0x10] sm:$0xff]
        %v2445 = vld [vmem:[%s2 + $0x18] sm:$0xff]
        %2447 = vset.pattern.permute.xlu0 0
        %2448 = vperm.xlu0 %2447, %v2442
        %v2449 = vpop.permute.xlu0 %2448
        %2452 = vset.pattern.permute.xlu0 0
        %2453 = vperm.xlu0 %2452, %v2443
        %v2454 = vpop.permute.xlu0 %2453
        %2457 = vset.pattern.permute.xlu0 0
        %2458 = vperm.xlu0 %2457, %v2444
        %v2459 = vpop.permute.xlu0 %2458
        %2462 = vset.pattern.permute.xlu0 0
        %2463 = vperm.xlu0 %2462, %v2445
        %v2464 = vpop.permute.xlu0 %2463
        %vm2466 = vcmask 293888
        %v2468 = vsel %vm2466, %v2424, 0
        %v2471 = vsel %vm2466, %v2425, 0
        %vm2473 = vcmask 1041408
        %v2475 = vsel %vm2473, %v2440, 0
        %v2478 = vsel %vm2473, %v2441, 0
        %2480 = vmatprep.subr.bf16.mxu0 0
        %2481 = vmatpush1.bf16.msra.mxu0 0
        %2482 = vmatprep.subr.bf16.mxu0 0
        %2483 = vmatpush1.bf16.msra.mxu0 0
        %2484 = vmatprep.subr.bf16.mxu0 0
        %2485 = vmatpush1.bf16.msra.mxu0 0
        %2486 = vmatprep.subr.bf16.mxu0 0
        %2487 = vmatpush1.bf16.msra.mxu0 0
        %2488 = vmatprep.subr.bf16.mxu0 0
        %2489 = vmatpush1.bf16.msra.mxu0 0
        %2490 = vmatprep.subr.bf16.mxu0 %v2478
        %2491 = vmatpush1.bf16.msra.mxu0 %v2475
        %2492 = vmatprep.subr.bf16.mxu0 %v2439
        %2493 = vmatpush1.bf16.msra.mxu0 %v2438
        %2494 = vmatprep.subr.bf16.mxu0 %v2437
        %2495 = vmatpush1.bf16.msra.mxu0 %v2436
        %2496 = vmatprep.subr.bf16.mxu0 0
        %2497 = vmatpush2.bf16.msra.mxu0 0
        %2498 = vmatprep.subr.bf16.mxu0 0
        %2499 = vmatpush2.bf16.msra.mxu0 0
        %2500 = vmatprep.subr.bf16.mxu0 0
        %2501 = vmatpush2.bf16.msra.mxu0 0
        %2502 = vmatprep.subr.bf16.mxu0 0
        %2503 = vmatpush2.bf16.msra.mxu0 0
        %2504 = vmatprep.subr.bf16.mxu0 0
        %2505 = vmatpush2.bf16.msra.mxu0 0
        %2506 = vmatprep.subr.bf16.mxu0 0
        %2507 = vmatpush2.bf16.msra.mxu0 0
        %2508 = vmatprep.subr.bf16.mxu0 0
        %2509 = vmatpush2.bf16.msra.mxu0 0
        %2510 = vmatprep.subr.bf16.mxu0 0
        %2511 = vmatpush2.bf16.msra.mxu0 0
        %2512 = vmatprep.mubr.bf16.mxu0 0
        %2513 = vmatmul.mubr.bf16.gmra.mxu0 %v2468
        %v2514 = vpop.f32.mrf.mxu0
        %v2515 = vadd.f32 %v2449, %v2514
        %v2516 = vpop.f32.mrf.mxu0
        %v2517 = vadd.f32 %v2449, %v2516
        %v2518 = vpop.f32.mrf.mxu0
        %v2519 = vadd.f32 %v2454, %v2518
        %v2520 = vpop.f32.mrf.mxu0
        %v2521 = vadd.f32 %v2454, %v2520
        %2522 = vmatprep.mubr.bf16.mxu0 0
        %2523 = vmatmul.mubr.bf16.gmra.mxu0 %v2471
        %v2524 = vpop.f32.mrf.mxu0
        %v2525 = vadd.f32 %v2459, %v2524
        %v2526 = vpop.f32.mrf.mxu0
        %v2527 = vadd.f32 %v2459, %v2526
        %v2528 = vpop.f32.mrf.mxu0
        %v2529 = vadd.f32 %v2464, %v2528
        %v2530 = vpop.f32.mrf.mxu0
        %v2531 = vadd.f32 %v2464, %v2530
        %2532 = vdwg.mxu0
        %2533 = vst [vmem:[%s188] sm:$0xff] %v2515
        %2534 = vst [vmem:[%s188 + $0x8] sm:$0xff] %v2517
        %2535 = vst [vmem:[%s188 + $0x10] sm:$0xff] %v2519
        %2536 = vst [vmem:[%s188 + $0x18] sm:$0xff] %v2521
        %2537 = vst [vmem:[%s188 + $0x20] sm:$0xff] %v2525
        %2538 = vst [vmem:[%s188 + $0x28] sm:$0xff] %v2527
        %2539 = vst [vmem:[%s188 + $0x30] sm:$0xff] %v2529
        %2540 = vst [vmem:[%s188 + $0x38] sm:$0xff] %v2531
        %s2541 = sand.u32 %s96, 1
        %s2542 = scalar_lea.sflag [#allocation6], %s2541
        %s2543 = sand.u32 %s96, 1
        %s2544 = smul.addr %s2543, 64
        %s2545 = scalar_lea.vmem [#allocation7], %s2544
        // Predicated region
        $region37: #{tpu_custom_call.1} parent=31 // pred_check
          %p2546 = pneg %p106
        $region38: #{tpu_custom_call.1} parent=31 // pred_check_branch
          %2548 = sbr.rel (%p2546) target = $region40
        $region39: #{tpu_custom_call.1} parent=31 // pred_region
          %s2550 = ssub.s32 1024, 1024
          %2551 = vsyncadd %s2542, %s2550
          %s2552 = smul.addr %s20, 8
          %s2553 = smul.addr %s2552, 128
          %s2554 = scalar_lea.hbm %s3, %s2553
          %s2555 = sshll.u32 %s2545, 4
          %s2556 = int_to_ptr.vmem [resolvable:$true] %s2555
          %2561 = dma.vmem_to_hbm [thread:$0]  %s2556, 1024, %s2554, %s2542, 256, 256, 16
        $region40: #{tpu_custom_call.1} parent=31 // pred_fallthru
          _
      $region32: #{tpu_custom_call.1} parent=5 // pred_fallthru
        _
      %p2562 = scmp.le.s32.totalorder 2, %s15
      // Predicated region
      $region41: #{tpu_custom_call.1} parent=5 // pred_check
        %p2563 = pneg %p2562
      $region42: #{tpu_custom_call.1} parent=5 // pred_check_branch
        %2565 = sbr.rel (%p2563) target = $region44
      $region43: #{tpu_custom_call.1} parent=5 // pred_region
        %s2566 = ssub.s32 %s15, 2
        // Predicated region
        $region45: #{tpu_custom_call.1} parent=43 // pred_check
          %p2567 = pneg %p112
        $region46: #{tpu_custom_call.1} parent=43 // pred_check_branch
          %2569 = sbr.rel (%p2567) target = $region48
        $region47: #{tpu_custom_call.1} parent=43 // pred_region
          %s2570 = sand.u32 %s97, 1
          %s2571 = scalar_lea.sflag [#allocation6], %s2570
          %s2572 = sand.u32 %s97, 1
          %s2573 = smul.addr %s2572, 64
          %s2574 = scalar_lea.vmem [#allocation7], %s2573
          %2575 = dma.done %s2571, 1024
        $region48: #{tpu_custom_call.1} parent=43 // pred_fallthru
          _
      $region44: #{tpu_custom_call.1} parent=5 // pred_fallthru
        _
    $region6: #{tpu_custom_call.1} parent=1 // loop_footer
      %s19 = sadd.s32 1, %s15
    $region7: #{tpu_custom_call.1} parent=1 // loop_footer_branch
      %14 = sbr.rel target = $region3
    $region8: #{tpu_custom_call.1} parent=1 // loop_exit
      _
    %2576 = vsyncpa [#allocation5], 1
    %s2577 = scalar_lea.sflag [#allocation5], 1
    %2578 = vsyncpa %s2577, 1
    %2579 = vsyncpa [#allocation6], 1
    %s2580 = scalar_lea.sflag [#allocation6], 1
    %2581 = vsyncpa %s2580, 1

</llo_original>
